<compile_context>
chip_gen: v7x
topology: tpu7x:2x2x1
jax: 0.10.0
libtpu: 0.0.40
codegen_flags: <defaults>
</compile_context>

<pallas_src>
import functools

import jax
import jax.numpy as jnp
from jax.experimental import pallas as pl
from jax.experimental.pallas import tpu as pltpu

LANE = 128
SUB = 8


def _round_up(x, m):
    return (x + m - 1) // m * m


# ----------------------------------------------------------------------------
# Fused Pallas kernel: im2col + all conv branches + relu + maxpool + fc.
# ----------------------------------------------------------------------------
def _fused_cnn_text_kernel(*refs, kernel_sizes, seq_len, t_pad, c_pad,
                           fuse_branches):
    """One grid step = one batch tile, everything computed in VMEM.

    refs (fuse_branches=True):
        emb:(tb,L_pad,E_pad)  w_all:(max_ks*E_pad, n_ks*C_pad)
        b_all:(1,n_ks*C_pad)  fc_w:(n_ks*C_pad,O_pad)  fc_b:(1,O_pad)
        out:(tb,O_pad)
    refs (fuse_branches=False):
        emb, [w_ks:(ks*E_pad,C_pad), b_ks:(1,C_pad)] * n_ks, fc_w, fc_b, out
    """
    n_ks = len(kernel_sizes)
    max_ks = max(kernel_sizes)
    emb_ref = refs[0]
    if fuse_branches:
        w_all_ref, b_all_ref = refs[1], refs[2]
        fc_w_ref, fc_b_ref, out_ref = refs[3], refs[4], refs[5]
    else:
        conv_refs = refs[1:1 + 2 * n_ks]
        fc_w_ref, fc_b_ref = refs[1 + 2 * n_ks], refs[2 + 2 * n_ks]
        out_ref = refs[3 + 2 * n_ks]

    emb = emb_ref[...]                                   # (tb, L_pad, E_pad)
    tb = emb.shape[0]
    e_pad = emb.shape[-1]

    # Shared im2col: materialize the max_ks shifted taps ONCE; every branch
    # consumes a lane-aligned K-prefix (slices at multiples of E_pad are
    # free), cutting the sublane-shifted copies from sum(ks) to max(ks).
    windows = jnp.concatenate(
        [emb[:, k:k + t_pad, :] for k in range(max_ks)], axis=-1)

    # Hoisted time-index iota, reused by every branch mask.
    n_cols = n_ks * c_pad if fuse_branches else c_pad
    t_idx = jax.lax.broadcasted_iota(jnp.int32, (tb, t_pad, n_cols), 1)

    if fuse_branches:
        # All branches in ONE deep-K, wide-N MXU matmul (N=n_ks*C_pad fills
        # the 256-wide v6e/v7x MXU).  Smaller-ks branches carry zero weights
        # on their unused taps, so valid outputs are unchanged.
        acc = jax.lax.dot_general(
            windows, w_all_ref[...],
            dimension_numbers=(((2,), (0,)), ((), ())),
            preferred_element_type=jnp.float32)          # (tb,t_pad,n_ks*C_pad)
        acc = jnp.maximum(acc + b_all_ref[...][None, :, :], 0.0)
        # Per-branch valid-time threshold selected by channel block.
        col = jax.lax.broadcasted_iota(jnp.int32, acc.shape, 2)
        thr = jnp.full_like(t_idx, seq_len - kernel_sizes[-1] + 1)
        for j in range(n_ks - 2, -1, -1):
            thr = jnp.where(col < (j + 1) * c_pad,
                            seq_len - kernel_sizes[j] + 1, thr)
        # Zero-mask is exact because it is applied post-ReLU (values >= 0).
        acc = jnp.where(t_idx < thr, acc, 0.0)
        feats = jnp.max(acc, axis=1)                     # (tb, n_ks*C_pad)
    else:
        pooled = []
        for idx, ks in enumerate(kernel_sizes):          # static Python loop
            w_ref = conv_refs[2 * idx]
            b_ref = conv_refs[2 * idx + 1]
            acc = jax.lax.dot_general(
                windows[:, :, :ks * e_pad], w_ref[...],
                dimension_numbers=(((2,), (0,)), ((), ())),
                preferred_element_type=jnp.float32)      # (tb, t_pad, C_pad)
            acc = jnp.maximum(acc + b_ref[...][None, :, :], 0.0)
            acc = jnp.where(t_idx < (seq_len - ks + 1), acc, 0.0)
            pooled.append(jnp.max(acc, axis=1))          # (tb, C_pad)
        feats = jnp.concatenate(pooled, axis=-1)         # (tb, n_ks*C_pad)

    feats = feats.astype(fc_w_ref.dtype)
    out_ref[...] = (
        jax.lax.dot_general(feats, fc_w_ref[...],
                            dimension_numbers=(((1,), (0,)), ((), ())),
                            preferred_element_type=jnp.float32)
        + fc_b_ref[...])


# ----------------------------------------------------------------------------
# Wrapper: gather + pad/cast params, size tb, call the fused kernel once.
# ----------------------------------------------------------------------------
def _vmem_capacity_bytes():
    try:
        return int(pltpu.get_tpu_info().vmem_capacity_bytes)
    except Exception:
        return 64 * 1024 * 1024      # conservative (v7x per-TC VMEM)


def _default_fuse_branches():
    # Wide-N branch fusion only pays when the MXU is >=256 wide (v6e / v7x);
    # on <=v5 (128-wide MXUs) the extra zero-tap FLOPs are a pure loss.
    try:
        kind = jax.devices()[0].device_kind.lower()
    except Exception:
        return True
    return not any(v in kind for v in ("v2", "v3", "v4", "v5"))


def cnn_text_forward(x_ids, params, kernel_sizes, *, batch_tile=256,
                     compute_dtype=jnp.bfloat16, vmem_budget_bytes=None,
                     fuse_branches=None):
    kernel_sizes = tuple(kernel_sizes)
    n_ks = len(kernel_sizes)
    max_ks = max(kernel_sizes)
    min_ks = min(kernel_sizes)
    B, L = x_ids.shape
    V, E = params["embed"].shape
    C = params[f"conv_b_{kernel_sizes[0]}"].shape[1]
    O = params["fc_b"].shape[1]
    assert L >= max_ks

    if fuse_branches is None:
        fuse_branches = _default_fuse_branches()
    if vmem_budget_bytes is None:
        # ~96 MiB on 128-MiB parts (v5e/v6e), ~48 MiB on v7x (64 MiB / TC).
        vmem_budget_bytes = int(_vmem_capacity_bytes()) * 3 // 4

    # Lane/sublane friendly padded sizes.
    E_pad = _round_up(E, LANE)
    C_pad = _round_up(C, LANE)
    O_pad = _round_up(O, LANE)
    T_pad = _round_up(L - min_ks + 1, SUB)          # padded output-time length
    L_pad = _round_up(T_pad + max_ks - 1, SUB)      # every tap slice in-bounds

    # ---- batch tile sized against the REAL in-kernel VMEM footprint ----
    itemsize = jnp.dtype(compute_dtype).itemsize
    n_all = n_ks * C_pad if fuse_branches else C_pad
    if fuse_branches:
        w_bytes = max_ks * E_pad * (n_ks * C_pad) * itemsize + n_ks * C_pad * 4
    else:
        w_bytes = (sum(ks * E_pad * C_pad for ks in kernel_sizes) * itemsize
                   + n_ks * C_pad * 4)
    w_bytes += n_ks * C_pad * O_pad * itemsize + O_pad * 4
    w_bytes *= 2      # grid-invariant operands are still double-buffered
    # TODO(synk): pipeline_mode=pl.Buffered(1) on the constant operands would
    # drop that factor of 2 (pure VMEM headroom); kept conservative here.

    def _tile_bytes(tb):
        emb_b = 2 * tb * L_pad * E_pad * itemsize            # double-buffered
        win_b = 2 * tb * T_pad * max_ks * E_pad * itemsize   # im2col + taps
        acc_b = tb * T_pad * n_all * 4                       # f32 accumulator
        feat_b = tb * n_ks * C_pad * 4
        out_b = 2 * tb * O_pad * 4
        return emb_b + win_b + acc_b + feat_b + out_b

    budget = int(vmem_budget_bytes * 0.85) - w_bytes
    B_ceil = _round_up(B, SUB)
    tb_cap = min(batch_tile, B_ceil)
    if B_ceil >= 2 * SUB:
        # >=2 grid steps so dimension_semantics=("parallel",) can shard the
        # batch across both TensorCores on v7x.
        tb_cap = min(tb_cap, max(SUB, (B_ceil // 2) // SUB * SUB))
    tb_cap = max(SUB, (tb_cap // SUB) * SUB)
    tb = SUB
    for cand in range(tb_cap, SUB - 1, -SUB):
        if _tile_bytes(cand) <= budget:
            tb = cand
            break
    B_pad = _round_up(B, tb)

    # ---- HBM-side prep (plain JAX glue) ----
    # The embedding gather stays in XLA but reads a lane-padded bf16 table
    # with padded ids, so exactly one padded activation is written to HBM
    # (no second zero-init + copy pass).
    # TODO(synk): a fully in-kernel gather (scalar-prefetched ids + per-token
    # make_async_copy from an HBM table) removes this HBM round trip but costs
    # one scalar-issued DMA descriptor per token, which loses to the XLA
    # gather at realistic B*L; would need batched-row DMA (SparseCore-style)
    # to win.
    table_p = (jnp.zeros((V, E_pad), compute_dtype)
               .at[:, :E].set(params["embed"].astype(compute_dtype)))
    ids_p = (jnp.zeros((B_pad, L_pad), jnp.int32)
             .at[:B, :L].set(x_ids.astype(jnp.int32)))
    emb_p = jnp.take(table_p, ids_p, axis=0)        # (B_pad, L_pad, E_pad)

    in_specs = [pl.BlockSpec((tb, L_pad, E_pad), lambda i: (i, 0, 0))]
    conv_args = []
    if fuse_branches:
        w_all = jnp.zeros((max_ks * E_pad, n_ks * C_pad), compute_dtype)
        b_all = jnp.zeros((1, n_ks * C_pad), jnp.float32)
        for j, ks in enumerate(kernel_sizes):
            w = params[f"conv_w_{ks}"].astype(compute_dtype)      # (ks, E, C)
            w_p = (jnp.zeros((ks, E_pad, C), compute_dtype)
                   .at[:, :E, :].set(w).reshape(ks * E_pad, C))
            w_all = w_all.at[:ks * E_pad, j * C_pad:j * C_pad + C].set(w_p)
            b_all = b_all.at[:, j * C_pad:j * C_pad + C].set(
                params[f"conv_b_{ks}"].astype(jnp.float32))
        conv_args = [w_all, b_all]
        in_specs += [
            pl.BlockSpec((max_ks * E_pad, n_ks * C_pad), lambda i: (0, 0)),
            pl.BlockSpec((1, n_ks * C_pad), lambda i: (0, 0)),
        ]
    else:
        for ks in kernel_sizes:
            w = params[f"conv_w_{ks}"].astype(compute_dtype)      # (ks, E, C)
            w_p = (jnp.zeros((ks, E_pad, C_pad), compute_dtype)
                   .at[:, :E, :C].set(w).reshape(ks * E_pad, C_pad))
            b_p = jnp.zeros((1, C_pad), jnp.float32).at[:, :C].set(
                params[f"conv_b_{ks}"].astype(jnp.float32))
            conv_args += [w_p, b_p]
            in_specs += [pl.BlockSpec((ks * E_pad, C_pad), lambda i: (0, 0)),
                         pl.BlockSpec((1, C_pad), lambda i: (0, 0))]

    fc_w = params["fc_w"]                                         # (n_ks*C, O)
    fc_w_p = jnp.zeros((n_ks * C_pad, O_pad), compute_dtype)
    for j in range(n_ks):
        fc_w_p = fc_w_p.at[j * C_pad:j * C_pad + C, :O].set(
            fc_w[j * C:(j + 1) * C, :].astype(compute_dtype))
    fc_b_p = jnp.zeros((1, O_pad), jnp.float32).at[:, :O].set(
        params["fc_b"].astype(jnp.float32))
    in_specs += [pl.BlockSpec((n_ks * C_pad, O_pad), lambda i: (0, 0)),
                 pl.BlockSpec((1, O_pad), lambda i: (0, 0))]

    out_full = pl.pallas_call(
        functools.partial(_fused_cnn_text_kernel,
                          kernel_sizes=kernel_sizes, seq_len=L, t_pad=T_pad,
                          c_pad=C_pad, fuse_branches=fuse_branches),
        out_shape=jax.ShapeDtypeStruct((B_pad, O_pad), jnp.float32),
        grid=(B_pad // tb,),
        in_specs=in_specs,
        out_specs=pl.BlockSpec((tb, O_pad), lambda i: (i, 0)),
        compiler_params=pltpu.CompilerParams(
            dimension_semantics=("parallel",),
            vmem_limit_bytes=int(vmem_budget_bytes)),
    )(emb_p, *conv_args, fc_w_p, fc_b_p)

    # TODO(synk): dropout is identity at inference; training-mode RNG masking
    # (pltpu.prng_random_bits) is omitted to match eval semantics.
    # TODO(synk): optional fp8 weights/activations on v7x (2x MXU throughput)
    # left out pending accuracy validation against the f32 reference.
    return out_full[:B, :O]


# ----------------------------------------------------------------------------
# Pure-JAX reference (f32), parameter init, demo
# ----------------------------------------------------------------------------
def cnn_text_reference(x_ids, params, kernel_sizes):
    emb = jnp.take(params["embed"], x_ids, axis=0)              # (B, L, E)
    L = emb.shape[1]
    pooled = []
    for ks in kernel_sizes:
        w = params[f"conv_w_{ks}"]                              # (ks, E, C)
        b = params[f"conv_b_{ks}"]                              # (1, C)
        T = L - ks + 1
        acc = b[None, :, :]
        for k in range(ks):
            acc = acc + jnp.einsum("bte,ec->btc", emb[:, k:k + T, :], w[k])
        acc = jnp.maximum(acc, 0.0)
        pooled.append(jnp.max(acc, axis=1))
    feats = jnp.concatenate(pooled, axis=1)
    return feats @ params["fc_w"] + params["fc_b"]


def init_params(key, vocab, embed_dim, channel_dim, kernel_sizes, output_dim):
    params = {}
    keys = jax.random.split(key, 2 + 2 * len(kernel_sizes) + 2)
    ki = 0
    params["embed"] = jax.random.normal(
        keys[ki], (vocab, embed_dim), jnp.float32) * 0.1
    ki += 1
    for ks in kernel_sizes:
        # PyTorch Conv2d weight is (C, 1, ks, E); stored here as (ks, E, C).
        params[f"conv_w_{ks}"] = jax.random.normal(
            keys[ki], (ks, embed_dim, channel_dim), jnp.float32) * 0.1
        ki += 1
        params[f"conv_b_{ks}"] = jax.random.normal(
            keys[ki], (1, channel_dim), jnp.float32) * 0.1
        ki += 1
    in_features = len(kernel_sizes) * channel_dim
    # PyTorch Linear weight is (O, in); stored transposed as (in, O).
    params["fc_w"] = jax.random.normal(
        keys[ki], (in_features, output_dim), jnp.float32) * 0.1
    ki += 1
    params["fc_b"] = jax.random.normal(
        keys[ki], (1, output_dim), jnp.float32) * 0.1
    return params


if __name__ == "__main__":
    # Small shapes consistent with the module's forward.
    vocab_size = 50        # input_dim
    embed_dim = 32
    channel_dim = 8
    output_dim = 4
    kernel_sizes = (3, 4, 5)
    batch, seq_len = 2, 16

    key = jax.random.PRNGKey(0)
    k_x, k_p = jax.random.split(key)
    params = init_params(k_p, vocab_size, embed_dim, channel_dim,
                         kernel_sizes, output_dim)
    x = jax.random.randint(k_x, (batch, seq_len), 0, vocab_size, dtype=jnp.int32)

    fwd = jax.jit(functools.partial(cnn_text_forward, kernel_sizes=kernel_sizes))
    logits = fwd(x, params)
    jax.block_until_ready(logits)

    ref = cnn_text_reference(x, params, kernel_sizes)
    assert logits.shape == (batch, output_dim)
    assert jnp.allclose(logits, ref, atol=3e-2, rtol=3e-2), (
        "Pallas output diverges from f32 reference:\n"
        f"{logits}\nvs\n{ref}")
    print("KERNEL_OK")
</pallas_src>

<mosaic_0001>
module attributes {stable_mosaic.version = 11 : i64} {
  func.func @_fused_cnn_text_kernel(%arg0: i32, %arg1: memref<8x24x128xbf16, #tpu.memory_space<vmem>>, %arg2: memref<640x384xbf16, #tpu.memory_space<vmem>>, %arg3: memref<1x384xf32, #tpu.memory_space<vmem>>, %arg4: memref<384x128xbf16, #tpu.memory_space<vmem>>, %arg5: memref<1x128xf32, #tpu.memory_space<vmem>>, %arg6: memref<8x128xf32, #tpu.memory_space<vmem>>) attributes {dimension_semantics = [#tpu.dimension_semantics<parallel>], iteration_bounds = array<i64: 1>, scalar_prefetch = 0 : i64, scratch_operands = 0 : i64, tpu.core_type = #tpu.core_type<tc>, window_params = [{transform_indices = @transform_0, window_bounds = array<i64: 8, 24, 128>}, {pipeline_mode = #tpu.pipeline_mode<synchronous>, transform_indices = @transform_1, window_bounds = array<i64: 640, 384>}, {pipeline_mode = #tpu.pipeline_mode<synchronous>, transform_indices = @transform_2, window_bounds = array<i64: 1, 384>}, {pipeline_mode = #tpu.pipeline_mode<synchronous>, transform_indices = @transform_3, window_bounds = array<i64: 384, 128>}, {pipeline_mode = #tpu.pipeline_mode<synchronous>, transform_indices = @transform_4, window_bounds = array<i64: 1, 128>}, {transform_indices = @transform_5, window_bounds = array<i64: 8, 128>}]} {
    %c0 = arith.constant 0 : index
    %c0_0 = arith.constant 0 : index
    %c0_1 = arith.constant 0 : index
    %0 = vector.load %arg1[%c0, %c0_0, %c0_1] : memref<8x24x128xbf16, #tpu.memory_space<vmem>>, vector<8x24x128xbf16>
    %1 = vector.extract_strided_slice %0 {offsets = [0, 0, 0], sizes = [8, 16, 128], strides = [1, 1, 1]} : vector<8x24x128xbf16> to vector<8x16x128xbf16>
    %2 = vector.extract_strided_slice %0 {offsets = [0, 1, 0], sizes = [8, 16, 128], strides = [1, 1, 1]} : vector<8x24x128xbf16> to vector<8x16x128xbf16>
    %3 = vector.extract_strided_slice %0 {offsets = [0, 2, 0], sizes = [8, 16, 128], strides = [1, 1, 1]} : vector<8x24x128xbf16> to vector<8x16x128xbf16>
    %4 = vector.extract_strided_slice %0 {offsets = [0, 3, 0], sizes = [8, 16, 128], strides = [1, 1, 1]} : vector<8x24x128xbf16> to vector<8x16x128xbf16>
    %5 = vector.extract_strided_slice %0 {offsets = [0, 4, 0], sizes = [8, 16, 128], strides = [1, 1, 1]} : vector<8x24x128xbf16> to vector<8x16x128xbf16>
    %6 = tpu.concatenate %1, %2, %3, %4, %5 in 2 : vector<8x16x128xbf16>, vector<8x16x128xbf16>, vector<8x16x128xbf16>, vector<8x16x128xbf16>, vector<8x16x128xbf16> -> vector<8x16x640xbf16>
    %7 = tpu.iota {dimensions = array<i32: 1>} : vector<8x16x384xi32>
    %c0_2 = arith.constant 0 : index
    %c0_3 = arith.constant 0 : index
    %8 = vector.load %arg2[%c0_2, %c0_3] : memref<640x384xbf16, #tpu.memory_space<vmem>>, vector<640x384xbf16>
    %cst = arith.constant dense<0.000000e+00> : vector<8x16x384xf32>
    %9 = tpu.matmul %6, %8, %cst {dimension_numbers = #tpu.dot_dimension_numbers<[2], [0], [0, 1], [1], [0, 0, 0, 1, 1, 1], [], []>} : vector<8x16x640xbf16>, vector<640x384xbf16>, vector<8x16x384xf32> -> vector<8x16x384xf32>
    %c0_4 = arith.constant 0 : index
    %c0_5 = arith.constant 0 : index
    %10 = vector.load %arg3[%c0_4, %c0_5] : memref<1x384xf32, #tpu.memory_space<vmem>>, vector<1x384xf32>
    %11 = vector.shape_cast %10 : vector<1x384xf32> to vector<1x1x384xf32>
    %12 = vector.broadcast %11 : vector<1x1x384xf32> to vector<8x16x384xf32>
    %13 = arith.addf %9, %12 : vector<8x16x384xf32>
    %cst_6 = arith.constant 0.000000e+00 : f32
    %14 = vector.broadcast %cst_6 : f32 to vector<8x16x384xf32>
    %15 = arith.maximumf %13, %14 : vector<8x16x384xf32>
    %16 = tpu.iota {dimensions = array<i32: 2>} : vector<8x16x384xi32>
    %c12_i32 = arith.constant 12 : i32
    %17 = vector.broadcast %c12_i32 : i32 to vector<8x16x384xi32>
    %c256_i32 = arith.constant 256 : i32
    %18 = vector.broadcast %c256_i32 : i32 to vector<8x16x384xi32>
    %19 = arith.cmpi slt, %16, %18 : vector<8x16x384xi32>
    %c13_i32 = arith.constant 13 : i32
    %20 = vector.broadcast %c13_i32 : i32 to vector<8x16x384xi32>
    %21 = arith.select %19, %20, %17 : vector<8x16x384xi1>, vector<8x16x384xi32>
    %c128_i32 = arith.constant 128 : i32
    %22 = vector.broadcast %c128_i32 : i32 to vector<8x16x384xi32>
    %23 = arith.cmpi slt, %16, %22 : vector<8x16x384xi32>
    %c14_i32 = arith.constant 14 : i32
    %24 = vector.broadcast %c14_i32 : i32 to vector<8x16x384xi32>
    %25 = arith.select %23, %24, %21 : vector<8x16x384xi1>, vector<8x16x384xi32>
    %26 = arith.cmpi slt, %7, %25 : vector<8x16x384xi32>
    %cst_7 = arith.constant 0.000000e+00 : f32
    %27 = vector.broadcast %cst_7 : f32 to vector<8x16x384xf32>
    %28 = arith.select %26, %15, %27 : vector<8x16x384xi1>, vector<8x16x384xf32>
    %cst_8 = arith.constant dense<0xFF800000> : vector<8x384xf32>
    %29 = vector.multi_reduction <maximumf>, %28, %cst_8 [1] : vector<8x16x384xf32> to vector<8x384xf32>
    %30 = arith.truncf %29 : vector<8x384xf32> to vector<8x384xbf16>
    %c0_9 = arith.constant 0 : index
    %c0_10 = arith.constant 0 : index
    %31 = vector.load %arg4[%c0_9, %c0_10] : memref<384x128xbf16, #tpu.memory_space<vmem>>, vector<384x128xbf16>
    %cst_11 = arith.constant dense<0.000000e+00> : vector<8x128xf32>
    %32 = tpu.matmul %30, %31, %cst_11 {dimension_numbers = #tpu.dot_dimension_numbers<[1], [0], [0], [1], [0, 0, 1, 1], [], []>} : vector<8x384xbf16>, vector<384x128xbf16>, vector<8x128xf32> -> vector<8x128xf32>
    %c0_12 = arith.constant 0 : index
    %c0_13 = arith.constant 0 : index
    %33 = vector.load %arg5[%c0_12, %c0_13] : memref<1x128xf32, #tpu.memory_space<vmem>>, vector<1x128xf32>
    %34 = vector.broadcast %33 : vector<1x128xf32> to vector<8x128xf32>
    %35 = arith.addf %32, %34 : vector<8x128xf32>
    %c0_14 = arith.constant 0 : index
    %c0_15 = arith.constant 0 : index
    %36 = vector.load %arg6[%c0_14, %c0_15] : memref<8x128xf32, #tpu.memory_space<vmem>>, vector<8x128xf32>
    tpu.vector_store %arg6[%c0_14, %c0_15], %35 {strides = array<i32>} : memref<8x128xf32, #tpu.memory_space<vmem>>, vector<8x128xf32>,
    return
  }
  func.func @transform_0(%arg0: i32) -> (i32, i32, i32) {
    %c0_i32 = arith.constant 0 : i32
    %c0_i32_0 = arith.constant 0 : i32
    %c0_i32_1 = arith.constant 0 : i32
    return %arg0, %c0_i32, %c0_i32_0 : i32, i32, i32
  }
  func.func @transform_1(%arg0: i32) -> (i32, i32) {
    %c0_i32 = arith.constant 0 : i32
    %c0_i32_0 = arith.constant 0 : i32
    %c0_i32_1 = arith.constant 0 : i32
    return %c0_i32, %c0_i32_0 : i32, i32
  }
  func.func @transform_2(%arg0: i32) -> (i32, i32) {
    %c0_i32 = arith.constant 0 : i32
    %c0_i32_0 = arith.constant 0 : i32
    %c0_i32_1 = arith.constant 0 : i32
    return %c0_i32, %c0_i32_0 : i32, i32
  }
  func.func @transform_3(%arg0: i32) -> (i32, i32) {
    %c0_i32 = arith.constant 0 : i32
    %c0_i32_0 = arith.constant 0 : i32
    %c0_i32_1 = arith.constant 0 : i32
    return %c0_i32, %c0_i32_0 : i32, i32
  }
  func.func @transform_4(%arg0: i32) -> (i32, i32) {
    %c0_i32 = arith.constant 0 : i32
    %c0_i32_0 = arith.constant 0 : i32
    %c0_i32_1 = arith.constant 0 : i32
    return %c0_i32, %c0_i32_0 : i32, i32
  }
  func.func @transform_5(%arg0: i32) -> (i32, i32) {
    %c0_i32 = arith.constant 0 : i32
    %c0_i32_0 = arith.constant 0 : i32
    return %arg0, %c0_i32 : i32, i32
  }
}

</mosaic_0001>

<llo_original>
// kernel: cnn_text_forward.1
$region0: #{cnn_text_forward.1}
  #allocation0 [shape = 'u32[]', space=smem, size = 0x4, offset = 0x4, fixed_abs, tag = 'smem constant byte address 0x4 - core index']
  #allocation1 [shape = 'u32[144,128]{1,0:T(1,128)}', space=vmem, size = 0x12000, scoped, tag = 'internal scratch']
  %s0 = inlined_call_operand.vmem [shape: bf16[8,24,128], index: 0, kind: input, shape index: {}]
  %s1 = inlined_call_operand.vmem [shape: bf16[640,384], index: 1, kind: input, shape index: {}]
  %s2 = inlined_call_operand.vmem [shape: f32[1,384], index: 2, kind: input, shape index: {}]
  %s3 = inlined_call_operand.vmem [shape: bf16[384,128], index: 3, kind: input, shape index: {}]
  %s4 = inlined_call_operand.vmem [shape: f32[1,128], index: 4, kind: input, shape index: {}]
  %s5 = inlined_call_operand.vmem [shape: f32[8,128], index: 5, kind: output, shape index: {}]
  %s6 = sld [smem:[#allocation0]]
  $region30: #{cnn_text_forward.1} parent=0
    _
  %s8 = ssub.s32 1, %s6
  %s9 = scalar_select 0, %s8, %s6
  // Predicated region
  $region2: #{cnn_text_forward.1} parent=0 // pred_check
    _
  $region3: #{cnn_text_forward.1} parent=0 // pred_check_branch
    %11 = sbr.rel (0) target = $region5
  $region4: #{cnn_text_forward.1} parent=0 // pred_region
    _
  $region5: #{cnn_text_forward.1} parent=0 // pred_fallthru
    _
  // Predicated region
  $region6: #{cnn_text_forward.1} parent=0 // pred_check
    _
  $region7: #{cnn_text_forward.1} parent=0 // pred_check_branch
    %13 = sbr.rel (0) target = $region9
  $region8: #{cnn_text_forward.1} parent=0 // pred_region
    _
  $region9: #{cnn_text_forward.1} parent=0 // pred_fallthru
    _
  // Predicated region
  $region10: #{cnn_text_forward.1} parent=0 // pred_check
    _
  $region11: #{cnn_text_forward.1} parent=0 // pred_check_branch
    %15 = sbr.rel (0) target = $region13
  $region12: #{cnn_text_forward.1} parent=0 // pred_region
    _
  $region13: #{cnn_text_forward.1} parent=0 // pred_fallthru
    _
  // Predicated region
  $region14: #{cnn_text_forward.1} parent=0 // pred_check
    _
  $region15: #{cnn_text_forward.1} parent=0 // pred_check_branch
    %17 = sbr.rel (0) target = $region17
  $region16: #{cnn_text_forward.1} parent=0 // pred_region
    _
  $region17: #{cnn_text_forward.1} parent=0 // pred_fallthru
    _
  // Predicated region
  $region18: #{cnn_text_forward.1} parent=0 // pred_check
    _
  $region19: #{cnn_text_forward.1} parent=0 // pred_check_branch
    %19 = sbr.rel (0) target = $region21
  $region20: #{cnn_text_forward.1} parent=0 // pred_region
    _
  $region21: #{cnn_text_forward.1} parent=0 // pred_fallthru
    _
  %v21 = vld [vmem:[%s0] sm:$0xf]
  %v22 = vld [vmem:[%s0 + $0x4] sm:$0xf]
  %v23 = vld [vmem:[%s0 + $0x8] sm:$0xf]
  %v24 = vld [vmem:[%s0 + $0xc] sm:$0xf]
  %v25 = vld [vmem:[%s0 + $0x10] sm:$0xf]
  %v26 = vld [vmem:[%s0 + $0x14] sm:$0xf]
  %v27 = vld [vmem:[%s0 + $0x18] sm:$0xf]
  %v28 = vld [vmem:[%s0 + $0x1c] sm:$0xf]
  %v29 = vld [vmem:[%s0 + $0x20] sm:$0xf]
  %v30 = vld [vmem:[%s0 + $0x24] sm:$0xf]
  %v31 = vld [vmem:[%s0 + $0x28] sm:$0xf]
  %v32 = vld [vmem:[%s0 + $0x2c] sm:$0xf]
  %v33 = vld [vmem:[%s0 + $0x30] sm:$0xf]
  %v34 = vld [vmem:[%s0 + $0x34] sm:$0xf]
  %v35 = vld [vmem:[%s0 + $0x38] sm:$0xf]
  %v36 = vld [vmem:[%s0 + $0x3c] sm:$0xf]
  %v37 = vld [vmem:[%s0 + $0x40] sm:$0xf]
  %v38 = vld [vmem:[%s0 + $0x44] sm:$0xf]
  %v39 = vld [vmem:[%s0 + $0x48] sm:$0xf]
  %v40 = vld [vmem:[%s0 + $0x4c] sm:$0xf]
  %v41 = vld [vmem:[%s0 + $0x50] sm:$0xf]
  %v42 = vld [vmem:[%s0 + $0x54] sm:$0xf]
  %v43 = vld [vmem:[%s0 + $0x58] sm:$0xf]
  %v44 = vld [vmem:[%s0 + $0x5c] sm:$0xf]
  %v61 = vunpack.c.l.b16 %v21
  %v62 = vunpack.c.l.b16 %v22
  %v63 = vunpack.c.l.b16 %v24
  %v64 = vunpack.c.l.b16 %v25
  %v65 = vunpack.c.l.b16 %v27
  %v66 = vunpack.c.l.b16 %v28
  %v67 = vunpack.c.l.b16 %v30
  %v68 = vunpack.c.l.b16 %v31
  %v69 = vunpack.c.l.b16 %v33
  %v70 = vunpack.c.l.b16 %v34
  %v71 = vunpack.c.l.b16 %v36
  %v72 = vunpack.c.l.b16 %v37
  %v73 = vunpack.c.l.b16 %v39
  %v74 = vunpack.c.l.b16 %v40
  %v75 = vunpack.c.l.b16 %v42
  %v76 = vunpack.c.l.b16 %v43
  %v77 = vpack.c.b16 %v62, %v61
  %v78 = vpack.c.b16 %v64, %v63
  %v79 = vpack.c.b16 %v66, %v65
  %v80 = vpack.c.b16 %v68, %v67
  %v81 = vpack.c.b16 %v70, %v69
  %v82 = vpack.c.b16 %v72, %v71
  %v83 = vpack.c.b16 %v74, %v73
  %v84 = vpack.c.b16 %v76, %v75
  %v101 = vunpack.c.l.b16 %v23
  %v102 = vunpack.c.l.b16 %v26
  %v103 = vunpack.c.l.b16 %v29
  %v104 = vunpack.c.l.b16 %v32
  %v105 = vunpack.c.l.b16 %v35
  %v106 = vunpack.c.l.b16 %v38
  %v107 = vunpack.c.l.b16 %v41
  %v108 = vunpack.c.l.b16 %v44
  %v109 = vpack.c.b16 %v101, %v101
  %v110 = vpack.c.b16 %v102, %v102
  %v111 = vpack.c.b16 %v103, %v103
  %v112 = vpack.c.b16 %v104, %v104
  %v113 = vpack.c.b16 %v105, %v105
  %v114 = vpack.c.b16 %v106, %v106
  %v115 = vpack.c.b16 %v107, %v107
  %v116 = vpack.c.b16 %v108, %v108
  %vm117 = vsmask.f32 7424
  %v119 = vshrl.u32 %v77, 16
  %v121 = vshll.u32 %v77, 16
  %v123 = vrot.slane %v121, 1
  %v124 = vor.u32 %v119, %v123
  %v126 = vshll.u32 %v109, 16
  %v128 = vrot.slane %v126, 1
  %v129 = vsel %vm117, %v124, %v128
  %v131 = vshrl.u32 %v78, 16
  %v133 = vshll.u32 %v78, 16
  %v135 = vrot.slane %v133, 1
  %v136 = vor.u32 %v131, %v135
  %v138 = vshll.u32 %v110, 16
  %v140 = vrot.slane %v138, 1
  %v141 = vsel %vm117, %v136, %v140
  %v143 = vshrl.u32 %v79, 16
  %v145 = vshll.u32 %v79, 16
  %v147 = vrot.slane %v145, 1
  %v148 = vor.u32 %v143, %v147
  %v150 = vshll.u32 %v111, 16
  %v152 = vrot.slane %v150, 1
  %v153 = vsel %vm117, %v148, %v152
  %v155 = vshrl.u32 %v80, 16
  %v157 = vshll.u32 %v80, 16
  %v159 = vrot.slane %v157, 1
  %v160 = vor.u32 %v155, %v159
  %v162 = vshll.u32 %v112, 16
  %v164 = vrot.slane %v162, 1
  %v165 = vsel %vm117, %v160, %v164
  %v167 = vshrl.u32 %v81, 16
  %v169 = vshll.u32 %v81, 16
  %v171 = vrot.slane %v169, 1
  %v172 = vor.u32 %v167, %v171
  %v174 = vshll.u32 %v113, 16
  %v176 = vrot.slane %v174, 1
  %v177 = vsel %vm117, %v172, %v176
  %v179 = vshrl.u32 %v82, 16
  %v181 = vshll.u32 %v82, 16
  %v183 = vrot.slane %v181, 1
  %v184 = vor.u32 %v179, %v183
  %v186 = vshll.u32 %v114, 16
  %v188 = vrot.slane %v186, 1
  %v189 = vsel %vm117, %v184, %v188
  %v191 = vshrl.u32 %v83, 16
  %v193 = vshll.u32 %v83, 16
  %v195 = vrot.slane %v193, 1
  %v196 = vor.u32 %v191, %v195
  %v198 = vshll.u32 %v115, 16
  %v200 = vrot.slane %v198, 1
  %v201 = vsel %vm117, %v196, %v200
  %v203 = vshrl.u32 %v84, 16
  %v205 = vshll.u32 %v84, 16
  %v207 = vrot.slane %v205, 1
  %v208 = vor.u32 %v203, %v207
  %v210 = vshll.u32 %v116, 16
  %v212 = vrot.slane %v210, 1
  %v213 = vsel %vm117, %v208, %v212
  %vm222 = vcmask 1046528
  %v223 = vrot.slane %v77, 1
  %v224 = vrot.slane %v109, 1
  %v225 = vsel %vm222, %v223, %v224
  %v226 = vrot.slane %v78, 1
  %v227 = vrot.slane %v110, 1
  %v228 = vsel %vm222, %v226, %v227
  %v229 = vrot.slane %v79, 1
  %v230 = vrot.slane %v111, 1
  %v231 = vsel %vm222, %v229, %v230
  %v232 = vrot.slane %v80, 1
  %v233 = vrot.slane %v112, 1
  %v234 = vsel %vm222, %v232, %v233
  %v235 = vrot.slane %v81, 1
  %v236 = vrot.slane %v113, 1
  %v237 = vsel %vm222, %v235, %v236
  %v238 = vrot.slane %v82, 1
  %v239 = vrot.slane %v114, 1
  %v240 = vsel %vm222, %v238, %v239
  %v241 = vrot.slane %v83, 1
  %v242 = vrot.slane %v115, 1
  %v243 = vsel %vm222, %v241, %v242
  %v244 = vrot.slane %v84, 1
  %v245 = vrot.slane %v116, 1
  %v246 = vsel %vm222, %v244, %v245
  %vm255 = vsmask.f32 6400
  %v256 = vrot.slane %v119, 1
  %v257 = vrot.slane %v121, 2
  %v258 = vor.u32 %v256, %v257
  %v259 = vshrl.u32 %v109, 16
  %v261 = vrot.slane %v259, 1
  %v262 = vrot.slane %v126, 2
  %v263 = vor.u32 %v261, %v262
  %v264 = vsel %vm255, %v258, %v263
  %v265 = vrot.slane %v131, 1
  %v266 = vrot.slane %v133, 2
  %v267 = vor.u32 %v265, %v266
  %v268 = vshrl.u32 %v110, 16
  %v270 = vrot.slane %v268, 1
  %v271 = vrot.slane %v138, 2
  %v272 = vor.u32 %v270, %v271
  %v273 = vsel %vm255, %v267, %v272
  %v274 = vrot.slane %v143, 1
  %v275 = vrot.slane %v145, 2
  %v276 = vor.u32 %v274, %v275
  %v277 = vshrl.u32 %v111, 16
  %v279 = vrot.slane %v277, 1
  %v280 = vrot.slane %v150, 2
  %v281 = vor.u32 %v279, %v280
  %v282 = vsel %vm255, %v276, %v281
  %v283 = vrot.slane %v155, 1
  %v284 = vrot.slane %v157, 2
  %v285 = vor.u32 %v283, %v284
  %v286 = vshrl.u32 %v112, 16
  %v288 = vrot.slane %v286, 1
  %v289 = vrot.slane %v162, 2
  %v290 = vor.u32 %v288, %v289
  %v291 = vsel %vm255, %v285, %v290
  %v292 = vrot.slane %v167, 1
  %v293 = vrot.slane %v169, 2
  %v294 = vor.u32 %v292, %v293
  %v295 = vshrl.u32 %v113, 16
  %v297 = vrot.slane %v295, 1
  %v298 = vrot.slane %v174, 2
  %v299 = vor.u32 %v297, %v298
  %v300 = vsel %vm255, %v294, %v299
  %v301 = vrot.slane %v179, 1
  %v302 = vrot.slane %v181, 2
  %v303 = vor.u32 %v301, %v302
  %v304 = vshrl.u32 %v114, 16
  %v306 = vrot.slane %v304, 1
  %v307 = vrot.slane %v186, 2
  %v308 = vor.u32 %v306, %v307
  %v309 = vsel %vm255, %v303, %v308
  %v310 = vrot.slane %v191, 1
  %v311 = vrot.slane %v193, 2
  %v312 = vor.u32 %v310, %v311
  %v313 = vshrl.u32 %v115, 16
  %v315 = vrot.slane %v313, 1
  %v316 = vrot.slane %v198, 2
  %v317 = vor.u32 %v315, %v316
  %v318 = vsel %vm255, %v312, %v317
  %v319 = vrot.slane %v203, 1
  %v320 = vrot.slane %v205, 2
  %v321 = vor.u32 %v319, %v320
  %v322 = vshrl.u32 %v116, 16
  %v324 = vrot.slane %v322, 1
  %v325 = vrot.slane %v210, 2
  %v326 = vor.u32 %v324, %v325
  %v327 = vsel %vm255, %v321, %v326
  %vm336 = vcmask 1045504
  %v337 = vrot.slane %v77, 2
  %v338 = vrot.slane %v109, 2
  %v339 = vsel %vm336, %v337, %v338
  %v340 = vrot.slane %v78, 2
  %v341 = vrot.slane %v110, 2
  %v342 = vsel %vm336, %v340, %v341
  %v343 = vrot.slane %v79, 2
  %v344 = vrot.slane %v111, 2
  %v345 = vsel %vm336, %v343, %v344
  %v346 = vrot.slane %v80, 2
  %v347 = vrot.slane %v112, 2
  %v348 = vsel %vm336, %v346, %v347
  %v349 = vrot.slane %v81, 2
  %v350 = vrot.slane %v113, 2
  %v351 = vsel %vm336, %v349, %v350
  %v352 = vrot.slane %v82, 2
  %v353 = vrot.slane %v114, 2
  %v354 = vsel %vm336, %v352, %v353
  %v355 = vrot.slane %v83, 2
  %v356 = vrot.slane %v115, 2
  %v357 = vsel %vm336, %v355, %v356
  %v358 = vrot.slane %v84, 2
  %v359 = vrot.slane %v116, 2
  %v360 = vsel %vm336, %v358, %v359
  %v369 = vlaneseq
  %v370 = vshrl.u32 %v369, 7
  %v371 = vadd.s32 %v370, 8
  %v372 = vld [vmem:[%s1] sm:$0xff]
  %v373 = vld [vmem:[%s1 + $0x8] sm:$0xf]
  %v374 = vld [vmem:[%s1 + $0xc] sm:$0xff]
  %v375 = vld [vmem:[%s1 + $0x14] sm:$0xf]
  %v376 = vld [vmem:[%s1 + $0x18] sm:$0xff]
  %v377 = vld [vmem:[%s1 + $0x20] sm:$0xf]
  %v378 = vld [vmem:[%s1 + $0x24] sm:$0xff]
  %v379 = vld [vmem:[%s1 + $0x2c] sm:$0xf]
  %v380 = vld [vmem:[%s1 + $0x30] sm:$0xff]
  %v381 = vld [vmem:[%s1 + $0x38] sm:$0xf]
  %v382 = vld [vmem:[%s1 + $0x3c] sm:$0xff]
  %v383 = vld [vmem:[%s1 + $0x44] sm:$0xf]
  %v384 = vld [vmem:[%s1 + $0x48] sm:$0xff]
  %v385 = vld [vmem:[%s1 + $0x50] sm:$0xf]
  %v386 = vld [vmem:[%s1 + $0x54] sm:$0xff]
  %v387 = vld [vmem:[%s1 + $0x5c] sm:$0xf]
  %v388 = vld [vmem:[%s1 + $0x60] sm:$0xff]
  %v389 = vld [vmem:[%s1 + $0x68] sm:$0xf]
  %v390 = vld [vmem:[%s1 + $0x6c] sm:$0xff]
  %v391 = vld [vmem:[%s1 + $0x74] sm:$0xf]
  %v392 = vld [vmem:[%s1 + $0x78] sm:$0xff]
  %v393 = vld [vmem:[%s1 + $0x80] sm:$0xf]
  %v394 = vld [vmem:[%s1 + $0x84] sm:$0xff]
  %v395 = vld [vmem:[%s1 + $0x8c] sm:$0xf]
  %v396 = vld [vmem:[%s1 + $0x90] sm:$0xff]
  %v397 = vld [vmem:[%s1 + $0x98] sm:$0xf]
  %v398 = vld [vmem:[%s1 + $0x9c] sm:$0xff]
  %v399 = vld [vmem:[%s1 + $0xa4] sm:$0xf]
  %v400 = vld [vmem:[%s1 + $0xa8] sm:$0xff]
  %v401 = vld [vmem:[%s1 + $0xb0] sm:$0xf]
  %v402 = vld [vmem:[%s1 + $0xb4] sm:$0xff]
  %v403 = vld [vmem:[%s1 + $0xbc] sm:$0xf]
  %v404 = vld [vmem:[%s1 + $0xc0] sm:$0xff]
  %v405 = vld [vmem:[%s1 + $0xc8] sm:$0xf]
  %v406 = vld [vmem:[%s1 + $0xcc] sm:$0xff]
  %v407 = vld [vmem:[%s1 + $0xd4] sm:$0xf]
  %v408 = vld [vmem:[%s1 + $0xd8] sm:$0xff]
  %v409 = vld [vmem:[%s1 + $0xe0] sm:$0xf]
  %v410 = vld [vmem:[%s1 + $0xe4] sm:$0xff]
  %v411 = vld [vmem:[%s1 + $0xec] sm:$0xf]
  %v412 = vld [vmem:[%s1 + $0xf0] sm:$0xff]
  %v413 = vld [vmem:[%s1 + $0xf8] sm:$0xf]
  %v414 = vld [vmem:[%s1 + $0xfc] sm:$0xff]
  %v415 = vld [vmem:[%s1 + $0x104] sm:$0xf]
  %v416 = vld [vmem:[%s1 + $0x108] sm:$0xff]
  %v417 = vld [vmem:[%s1 + $0x110] sm:$0xf]
  %v418 = vld [vmem:[%s1 + $0x114] sm:$0xff]
  %v419 = vld [vmem:[%s1 + $0x11c] sm:$0xf]
  %v420 = vld [vmem:[%s1 + $0x120] sm:$0xff]
  %v421 = vld [vmem:[%s1 + $0x128] sm:$0xf]
  %v422 = vld [vmem:[%s1 + $0x12c] sm:$0xff]
  %v423 = vld [vmem:[%s1 + $0x134] sm:$0xf]
  %v424 = vld [vmem:[%s1 + $0x138] sm:$0xff]
  %v425 = vld [vmem:[%s1 + $0x140] sm:$0xf]
  %v426 = vld [vmem:[%s1 + $0x144] sm:$0xff]
  %v427 = vld [vmem:[%s1 + $0x14c] sm:$0xf]
  %v428 = vld [vmem:[%s1 + $0x150] sm:$0xff]
  %v429 = vld [vmem:[%s1 + $0x158] sm:$0xf]
  %v430 = vld [vmem:[%s1 + $0x15c] sm:$0xff]
  %v431 = vld [vmem:[%s1 + $0x164] sm:$0xf]
  %v432 = vld [vmem:[%s1 + $0x168] sm:$0xff]
  %v433 = vld [vmem:[%s1 + $0x170] sm:$0xf]
  %v434 = vld [vmem:[%s1 + $0x174] sm:$0xff]
  %v435 = vld [vmem:[%s1 + $0x17c] sm:$0xf]
  %v436 = vld [vmem:[%s1 + $0x180] sm:$0xff]
  %v437 = vld [vmem:[%s1 + $0x188] sm:$0xf]
  %v438 = vld [vmem:[%s1 + $0x18c] sm:$0xff]
  %v439 = vld [vmem:[%s1 + $0x194] sm:$0xf]
  %v440 = vld [vmem:[%s1 + $0x198] sm:$0xff]
  %v441 = vld [vmem:[%s1 + $0x1a0] sm:$0xf]
  %v442 = vld [vmem:[%s1 + $0x1a4] sm:$0xff]
  %v443 = vld [vmem:[%s1 + $0x1ac] sm:$0xf]
  %v444 = vld [vmem:[%s1 + $0x1b0] sm:$0xff]
  %v445 = vld [vmem:[%s1 + $0x1b8] sm:$0xf]
  %v446 = vld [vmem:[%s1 + $0x1bc] sm:$0xff]
  %v447 = vld [vmem:[%s1 + $0x1c4] sm:$0xf]
  %v448 = vld [vmem:[%s1 + $0x1c8] sm:$0xff]
  %v449 = vld [vmem:[%s1 + $0x1d0] sm:$0xf]
  %v450 = vld [vmem:[%s1 + $0x1d4] sm:$0xff]
  %v451 = vld [vmem:[%s1 + $0x1dc] sm:$0xf]
  %v452 = vld [vmem:[%s1 + $0x1e0] sm:$0xff]
  %v453 = vld [vmem:[%s1 + $0x1e8] sm:$0xf]
  %v454 = vld [vmem:[%s1 + $0x1ec] sm:$0xff]
  %v455 = vld [vmem:[%s1 + $0x1f4] sm:$0xf]
  %v456 = vld [vmem:[%s1 + $0x1f8] sm:$0xff]
  %v457 = vld [vmem:[%s1 + $0x200] sm:$0xf]
  %v458 = vld [vmem:[%s1 + $0x204] sm:$0xff]
  %v459 = vld [vmem:[%s1 + $0x20c] sm:$0xf]
  %v460 = vld [vmem:[%s1 + $0x210] sm:$0xff]
  %v461 = vld [vmem:[%s1 + $0x218] sm:$0xf]
  %v462 = vld [vmem:[%s1 + $0x21c] sm:$0xff]
  %v463 = vld [vmem:[%s1 + $0x224] sm:$0xf]
  %v464 = vld [vmem:[%s1 + $0x228] sm:$0xff]
  %v465 = vld [vmem:[%s1 + $0x230] sm:$0xf]
  %v466 = vld [vmem:[%s1 + $0x234] sm:$0xff]
  %v467 = vld [vmem:[%s1 + $0x23c] sm:$0xf]
  %v468 = vld [vmem:[%s1 + $0x240] sm:$0xff]
  %v469 = vld [vmem:[%s1 + $0x248] sm:$0xf]
  %v470 = vld [vmem:[%s1 + $0x24c] sm:$0xff]
  %v471 = vld [vmem:[%s1 + $0x254] sm:$0xf]
  %v472 = vld [vmem:[%s1 + $0x258] sm:$0xff]
  %v473 = vld [vmem:[%s1 + $0x260] sm:$0xf]
  %v474 = vld [vmem:[%s1 + $0x264] sm:$0xff]
  %v475 = vld [vmem:[%s1 + $0x26c] sm:$0xf]
  %v476 = vld [vmem:[%s1 + $0x270] sm:$0xff]
  %v477 = vld [vmem:[%s1 + $0x278] sm:$0xf]
  %v478 = vld [vmem:[%s1 + $0x27c] sm:$0xff]
  %v479 = vld [vmem:[%s1 + $0x284] sm:$0xf]
  %v480 = vld [vmem:[%s1 + $0x288] sm:$0xff]
  %v481 = vld [vmem:[%s1 + $0x290] sm:$0xf]
  %v482 = vld [vmem:[%s1 + $0x294] sm:$0xff]
  %v483 = vld [vmem:[%s1 + $0x29c] sm:$0xf]
  %v484 = vld [vmem:[%s1 + $0x2a0] sm:$0xff]
  %v485 = vld [vmem:[%s1 + $0x2a8] sm:$0xf]
  %v486 = vld [vmem:[%s1 + $0x2ac] sm:$0xff]
  %v487 = vld [vmem:[%s1 + $0x2b4] sm:$0xf]
  %v488 = vld [vmem:[%s1 + $0x2b8] sm:$0xff]
  %v489 = vld [vmem:[%s1 + $0x2c0] sm:$0xf]
  %v490 = vld [vmem:[%s1 + $0x2c4] sm:$0xff]
  %v491 = vld [vmem:[%s1 + $0x2cc] sm:$0xf]
  %v492 = vld [vmem:[%s1 + $0x2d0] sm:$0xff]
  %v493 = vld [vmem:[%s1 + $0x2d8] sm:$0xf]
  %v494 = vld [vmem:[%s1 + $0x2dc] sm:$0xff]
  %v495 = vld [vmem:[%s1 + $0x2e4] sm:$0xf]
  %v496 = vld [vmem:[%s1 + $0x2e8] sm:$0xff]
  %v497 = vld [vmem:[%s1 + $0x2f0] sm:$0xf]
  %v498 = vld [vmem:[%s1 + $0x2f4] sm:$0xff]
  %v499 = vld [vmem:[%s1 + $0x2fc] sm:$0xf]
  %v500 = vld [vmem:[%s1 + $0x300] sm:$0xff]
  %v501 = vld [vmem:[%s1 + $0x308] sm:$0xf]
  %v502 = vld [vmem:[%s1 + $0x30c] sm:$0xff]
  %v503 = vld [vmem:[%s1 + $0x314] sm:$0xf]
  %v504 = vld [vmem:[%s1 + $0x318] sm:$0xff]
  %v505 = vld [vmem:[%s1 + $0x320] sm:$0xf]
  %v506 = vld [vmem:[%s1 + $0x324] sm:$0xff]
  %v507 = vld [vmem:[%s1 + $0x32c] sm:$0xf]
  %v508 = vld [vmem:[%s1 + $0x330] sm:$0xff]
  %v509 = vld [vmem:[%s1 + $0x338] sm:$0xf]
  %v510 = vld [vmem:[%s1 + $0x33c] sm:$0xff]
  %v511 = vld [vmem:[%s1 + $0x344] sm:$0xf]
  %v512 = vld [vmem:[%s1 + $0x348] sm:$0xff]
  %v513 = vld [vmem:[%s1 + $0x350] sm:$0xf]
  %v514 = vld [vmem:[%s1 + $0x354] sm:$0xff]
  %v515 = vld [vmem:[%s1 + $0x35c] sm:$0xf]
  %v516 = vld [vmem:[%s1 + $0x360] sm:$0xff]
  %v517 = vld [vmem:[%s1 + $0x368] sm:$0xf]
  %v518 = vld [vmem:[%s1 + $0x36c] sm:$0xff]
  %v519 = vld [vmem:[%s1 + $0x374] sm:$0xf]
  %v520 = vld [vmem:[%s1 + $0x378] sm:$0xff]
  %v521 = vld [vmem:[%s1 + $0x380] sm:$0xf]
  %v522 = vld [vmem:[%s1 + $0x384] sm:$0xff]
  %v523 = vld [vmem:[%s1 + $0x38c] sm:$0xf]
  %v524 = vld [vmem:[%s1 + $0x390] sm:$0xff]
  %v525 = vld [vmem:[%s1 + $0x398] sm:$0xf]
  %v526 = vld [vmem:[%s1 + $0x39c] sm:$0xff]
  %v527 = vld [vmem:[%s1 + $0x3a4] sm:$0xf]
  %v528 = vld [vmem:[%s1 + $0x3a8] sm:$0xff]
  %v529 = vld [vmem:[%s1 + $0x3b0] sm:$0xf]
  %v530 = vld [vmem:[%s1 + $0x3b4] sm:$0xff]
  %v531 = vld [vmem:[%s1 + $0x3bc] sm:$0xf]
  %v532 = vld [vmem:[%s2] sm:$0x7]
  %v534 = vlaneseq
  %v535 = vshrl.u32 %v534, 7
  %v536 = vsub.s32 0, %v535
  %v537 = vrot.slane %v532, %v536
  %v538 = vlaneseq
  %v539 = vshrl.u32 %v538, 7
  %v540 = vsub.s32 1, %v539
  %v541 = vrot.slane %v532, %v540
  %v542 = vlaneseq
  %v543 = vshrl.u32 %v542, 7
  %v544 = vsub.s32 2, %v543
  %v545 = vrot.slane %v532, %v544
  %v709 = vunpack.c.l.b16 %v372
  %v710 = vunpack.c.h.b16 %v372
  %v711 = vunpack.c.l.b16 %v373
  %v712 = vunpack.c.l.b16 %v374
  %v713 = vunpack.c.h.b16 %v374
  %v714 = vunpack.c.l.b16 %v375
  %v715 = vunpack.c.l.b16 %v376
  %v716 = vunpack.c.h.b16 %v376
  %v717 = vunpack.c.l.b16 %v377
  %v718 = vunpack.c.l.b16 %v378
  %v719 = vunpack.c.h.b16 %v378
  %v720 = vunpack.c.l.b16 %v379
  %v721 = vunpack.c.l.b16 %v380
  %v722 = vunpack.c.h.b16 %v380
  %v723 = vunpack.c.l.b16 %v381
  %v724 = vunpack.c.l.b16 %v382
  %v725 = vunpack.c.h.b16 %v382
  %v726 = vunpack.c.l.b16 %v383
  %v727 = vunpack.c.l.b16 %v384
  %v728 = vunpack.c.h.b16 %v384
  %v729 = vunpack.c.l.b16 %v385
  %v730 = vunpack.c.l.b16 %v386
  %v731 = vunpack.c.h.b16 %v386
  %v732 = vunpack.c.l.b16 %v387
  %v733 = vunpack.c.l.b16 %v388
  %v734 = vunpack.c.h.b16 %v388
  %v735 = vunpack.c.l.b16 %v389
  %v736 = vunpack.c.l.b16 %v390
  %v737 = vunpack.c.h.b16 %v390
  %v738 = vunpack.c.l.b16 %v391
  %v739 = vunpack.c.l.b16 %v392
  %v740 = vunpack.c.h.b16 %v392
  %v741 = vunpack.c.l.b16 %v393
  %v742 = vunpack.c.l.b16 %v394
  %v743 = vunpack.c.h.b16 %v394
  %v744 = vunpack.c.l.b16 %v395
  %v745 = vunpack.c.l.b16 %v396
  %v746 = vunpack.c.h.b16 %v396
  %v747 = vunpack.c.l.b16 %v397
  %v748 = vunpack.c.l.b16 %v398
  %v749 = vunpack.c.h.b16 %v398
  %v750 = vunpack.c.l.b16 %v399
  %v751 = vunpack.c.l.b16 %v400
  %v752 = vunpack.c.h.b16 %v400
  %v753 = vunpack.c.l.b16 %v401
  %v754 = vunpack.c.l.b16 %v402
  %v755 = vunpack.c.h.b16 %v402
  %v756 = vunpack.c.l.b16 %v403
  %v757 = vunpack.c.l.b16 %v404
  %v758 = vunpack.c.h.b16 %v404
  %v759 = vunpack.c.l.b16 %v405
  %v760 = vunpack.c.l.b16 %v406
  %v761 = vunpack.c.h.b16 %v406
  %v762 = vunpack.c.l.b16 %v407
  %v763 = vunpack.c.l.b16 %v408
  %v764 = vunpack.c.h.b16 %v408
  %v765 = vunpack.c.l.b16 %v409
  %v766 = vunpack.c.l.b16 %v410
  %v767 = vunpack.c.h.b16 %v410
  %v768 = vunpack.c.l.b16 %v411
  %v769 = vunpack.c.l.b16 %v412
  %v770 = vunpack.c.h.b16 %v412
  %v771 = vunpack.c.l.b16 %v413
  %v772 = vunpack.c.l.b16 %v414
  %v773 = vunpack.c.h.b16 %v414
  %v774 = vunpack.c.l.b16 %v415
  %v775 = vunpack.c.l.b16 %v416
  %v776 = vunpack.c.h.b16 %v416
  %v777 = vunpack.c.l.b16 %v417
  %v778 = vunpack.c.l.b16 %v418
  %v779 = vunpack.c.h.b16 %v418
  %v780 = vunpack.c.l.b16 %v419
  %v781 = vunpack.c.l.b16 %v420
  %v782 = vunpack.c.h.b16 %v420
  %v783 = vunpack.c.l.b16 %v421
  %v784 = vunpack.c.l.b16 %v422
  %v785 = vunpack.c.h.b16 %v422
  %v786 = vunpack.c.l.b16 %v423
  %v787 = vunpack.c.l.b16 %v424
  %v788 = vunpack.c.h.b16 %v424
  %v789 = vunpack.c.l.b16 %v425
  %v790 = vunpack.c.l.b16 %v426
  %v791 = vunpack.c.h.b16 %v426
  %v792 = vunpack.c.l.b16 %v427
  %v793 = vunpack.c.l.b16 %v428
  %v794 = vunpack.c.h.b16 %v428
  %v795 = vunpack.c.l.b16 %v429
  %v796 = vunpack.c.l.b16 %v430
  %v797 = vunpack.c.h.b16 %v430
  %v798 = vunpack.c.l.b16 %v431
  %v799 = vunpack.c.l.b16 %v432
  %v800 = vunpack.c.h.b16 %v432
  %v801 = vunpack.c.l.b16 %v433
  %v802 = vunpack.c.l.b16 %v434
  %v803 = vunpack.c.h.b16 %v434
  %v804 = vunpack.c.l.b16 %v435
  %v805 = vunpack.c.l.b16 %v436
  %v806 = vunpack.c.h.b16 %v436
  %v807 = vunpack.c.l.b16 %v437
  %v808 = vunpack.c.l.b16 %v438
  %v809 = vunpack.c.h.b16 %v438
  %v810 = vunpack.c.l.b16 %v439
  %v811 = vunpack.c.l.b16 %v440
  %v812 = vunpack.c.h.b16 %v440
  %v813 = vunpack.c.l.b16 %v441
  %v814 = vunpack.c.l.b16 %v442
  %v815 = vunpack.c.h.b16 %v442
  %v816 = vunpack.c.l.b16 %v443
  %v817 = vunpack.c.l.b16 %v444
  %v818 = vunpack.c.h.b16 %v444
  %v819 = vunpack.c.l.b16 %v445
  %v820 = vunpack.c.l.b16 %v446
  %v821 = vunpack.c.h.b16 %v446
  %v822 = vunpack.c.l.b16 %v447
  %v823 = vunpack.c.l.b16 %v448
  %v824 = vunpack.c.h.b16 %v448
  %v825 = vunpack.c.l.b16 %v449
  %v826 = vunpack.c.l.b16 %v450
  %v827 = vunpack.c.h.b16 %v450
  %v828 = vunpack.c.l.b16 %v451
  %v829 = vunpack.c.l.b16 %v452
  %v830 = vunpack.c.h.b16 %v452
  %v831 = vunpack.c.l.b16 %v453
  %v832 = vunpack.c.l.b16 %v454
  %v833 = vunpack.c.h.b16 %v454
  %v834 = vunpack.c.l.b16 %v455
  %v835 = vunpack.c.l.b16 %v456
  %v836 = vunpack.c.h.b16 %v456
  %v837 = vunpack.c.l.b16 %v457
  %v838 = vunpack.c.l.b16 %v458
  %v839 = vunpack.c.h.b16 %v458
  %v840 = vunpack.c.l.b16 %v459
  %v841 = vunpack.c.l.b16 %v460
  %v842 = vunpack.c.h.b16 %v460
  %v843 = vunpack.c.l.b16 %v461
  %v844 = vunpack.c.l.b16 %v462
  %v845 = vunpack.c.h.b16 %v462
  %v846 = vunpack.c.l.b16 %v463
  %v847 = vunpack.c.l.b16 %v464
  %v848 = vunpack.c.h.b16 %v464
  %v849 = vunpack.c.l.b16 %v465
  %v850 = vunpack.c.l.b16 %v466
  %v851 = vunpack.c.h.b16 %v466
  %v852 = vunpack.c.l.b16 %v467
  %v853 = vunpack.c.l.b16 %v468
  %v854 = vunpack.c.h.b16 %v468
  %v855 = vunpack.c.l.b16 %v469
  %v856 = vunpack.c.l.b16 %v470
  %v857 = vunpack.c.h.b16 %v470
  %v858 = vunpack.c.l.b16 %v471
  %v859 = vunpack.c.l.b16 %v472
  %v860 = vunpack.c.h.b16 %v472
  %v861 = vunpack.c.l.b16 %v473
  %v862 = vunpack.c.l.b16 %v474
  %v863 = vunpack.c.h.b16 %v474
  %v864 = vunpack.c.l.b16 %v475
  %v865 = vunpack.c.l.b16 %v476
  %v866 = vunpack.c.h.b16 %v476
  %v867 = vunpack.c.l.b16 %v477
  %v868 = vunpack.c.l.b16 %v478
  %v869 = vunpack.c.h.b16 %v478
  %v870 = vunpack.c.l.b16 %v479
  %v871 = vunpack.c.l.b16 %v480
  %v872 = vunpack.c.h.b16 %v480
  %v873 = vunpack.c.l.b16 %v481
  %v874 = vunpack.c.l.b16 %v482
  %v875 = vunpack.c.h.b16 %v482
  %v876 = vunpack.c.l.b16 %v483
  %v877 = vunpack.c.l.b16 %v484
  %v878 = vunpack.c.h.b16 %v484
  %v879 = vunpack.c.l.b16 %v485
  %v880 = vunpack.c.l.b16 %v486
  %v881 = vunpack.c.h.b16 %v486
  %v882 = vunpack.c.l.b16 %v487
  %v883 = vunpack.c.l.b16 %v488
  %v884 = vunpack.c.h.b16 %v488
  %v885 = vunpack.c.l.b16 %v489
  %v886 = vunpack.c.l.b16 %v490
  %v887 = vunpack.c.h.b16 %v490
  %v888 = vunpack.c.l.b16 %v491
  %v889 = vunpack.c.l.b16 %v492
  %v890 = vunpack.c.h.b16 %v492
  %v891 = vunpack.c.l.b16 %v493
  %v892 = vunpack.c.l.b16 %v494
  %v893 = vunpack.c.h.b16 %v494
  %v894 = vunpack.c.l.b16 %v495
  %v895 = vunpack.c.l.b16 %v496
  %v896 = vunpack.c.h.b16 %v496
  %v897 = vunpack.c.l.b16 %v497
  %v898 = vunpack.c.l.b16 %v498
  %v899 = vunpack.c.h.b16 %v498
  %v900 = vunpack.c.l.b16 %v499
  %v901 = vunpack.c.l.b16 %v500
  %v902 = vunpack.c.h.b16 %v500
  %v903 = vunpack.c.l.b16 %v501
  %v904 = vunpack.c.l.b16 %v502
  %v905 = vunpack.c.h.b16 %v502
  %v906 = vunpack.c.l.b16 %v503
  %v907 = vunpack.c.l.b16 %v504
  %v908 = vunpack.c.h.b16 %v504
  %v909 = vunpack.c.l.b16 %v505
  %v910 = vunpack.c.l.b16 %v506
  %v911 = vunpack.c.h.b16 %v506
  %v912 = vunpack.c.l.b16 %v507
  %v913 = vunpack.c.l.b16 %v508
  %v914 = vunpack.c.h.b16 %v508
  %v915 = vunpack.c.l.b16 %v509
  %v916 = vunpack.c.l.b16 %v510
  %v917 = vunpack.c.h.b16 %v510
  %v918 = vunpack.c.l.b16 %v511
  %v919 = vunpack.c.l.b16 %v512
  %v920 = vunpack.c.h.b16 %v512
  %v921 = vunpack.c.l.b16 %v513
  %v922 = vunpack.c.l.b16 %v514
  %v923 = vunpack.c.h.b16 %v514
  %v924 = vunpack.c.l.b16 %v515
  %v925 = vunpack.c.l.b16 %v516
  %v926 = vunpack.c.h.b16 %v516
  %v927 = vunpack.c.l.b16 %v517
  %v928 = vunpack.c.l.b16 %v518
  %v929 = vunpack.c.h.b16 %v518
  %v930 = vunpack.c.l.b16 %v519
  %v931 = vunpack.c.l.b16 %v520
  %v932 = vunpack.c.h.b16 %v520
  %v933 = vunpack.c.l.b16 %v521
  %v934 = vunpack.c.l.b16 %v522
  %v935 = vunpack.c.h.b16 %v522
  %v936 = vunpack.c.l.b16 %v523
  %v937 = vunpack.c.l.b16 %v524
  %v938 = vunpack.c.h.b16 %v524
  %v939 = vunpack.c.l.b16 %v525
  %v940 = vunpack.c.l.b16 %v526
  %v941 = vunpack.c.h.b16 %v526
  %v942 = vunpack.c.l.b16 %v527
  %v943 = vunpack.c.l.b16 %v528
  %v944 = vunpack.c.h.b16 %v528
  %v945 = vunpack.c.l.b16 %v529
  %v946 = vunpack.c.l.b16 %v530
  %v947 = vunpack.c.h.b16 %v530
  %v948 = vunpack.c.l.b16 %v531
  %v949 = vpack.c.b16 %v712, %v709
  %v950 = vpack.c.b16 %v713, %v710
  %v951 = vpack.c.b16 %v714, %v711
  %v952 = vpack.c.b16 %v718, %v715
  %v953 = vpack.c.b16 %v719, %v716
  %v954 = vpack.c.b16 %v720, %v717
  %v955 = vpack.c.b16 %v724, %v721
  %v956 = vpack.c.b16 %v725, %v722
  %v957 = vpack.c.b16 %v726, %v723
  %v958 = vpack.c.b16 %v730, %v727
  %v959 = vpack.c.b16 %v731, %v728
  %v960 = vpack.c.b16 %v732, %v729
  %v961 = vpack.c.b16 %v736, %v733
  %v962 = vpack.c.b16 %v737, %v734
  %v963 = vpack.c.b16 %v738, %v735
  %v964 = vpack.c.b16 %v742, %v739
  %v965 = vpack.c.b16 %v743, %v740
  %v966 = vpack.c.b16 %v744, %v741
  %v967 = vpack.c.b16 %v748, %v745
  %v968 = vpack.c.b16 %v749, %v746
  %v969 = vpack.c.b16 %v750, %v747
  %v970 = vpack.c.b16 %v754, %v751
  %v971 = vpack.c.b16 %v755, %v752
  %v972 = vpack.c.b16 %v756, %v753
  %v973 = vpack.c.b16 %v760, %v757
  %v974 = vpack.c.b16 %v761, %v758
  %v975 = vpack.c.b16 %v762, %v759
  %v976 = vpack.c.b16 %v766, %v763
  %v977 = vpack.c.b16 %v767, %v764
  %v978 = vpack.c.b16 %v768, %v765
  %v979 = vpack.c.b16 %v772, %v769
  %v980 = vpack.c.b16 %v773, %v770
  %v981 = vpack.c.b16 %v774, %v771
  %v982 = vpack.c.b16 %v778, %v775
  %v983 = vpack.c.b16 %v779, %v776
  %v984 = vpack.c.b16 %v780, %v777
  %v985 = vpack.c.b16 %v784, %v781
  %v986 = vpack.c.b16 %v785, %v782
  %v987 = vpack.c.b16 %v786, %v783
  %v988 = vpack.c.b16 %v790, %v787
  %v989 = vpack.c.b16 %v791, %v788
  %v990 = vpack.c.b16 %v792, %v789
  %v991 = vpack.c.b16 %v796, %v793
  %v992 = vpack.c.b16 %v797, %v794
  %v993 = vpack.c.b16 %v798, %v795
  %v994 = vpack.c.b16 %v802, %v799
  %v995 = vpack.c.b16 %v803, %v800
  %v996 = vpack.c.b16 %v804, %v801
  %v997 = vpack.c.b16 %v808, %v805
  %v998 = vpack.c.b16 %v809, %v806
  %v999 = vpack.c.b16 %v810, %v807
  %v1000 = vpack.c.b16 %v814, %v811
  %v1001 = vpack.c.b16 %v815, %v812
  %v1002 = vpack.c.b16 %v816, %v813
  %v1003 = vpack.c.b16 %v820, %v817
  %v1004 = vpack.c.b16 %v821, %v818
  %v1005 = vpack.c.b16 %v822, %v819
  %v1006 = vpack.c.b16 %v826, %v823
  %v1007 = vpack.c.b16 %v827, %v824
  %v1008 = vpack.c.b16 %v828, %v825
  %v1009 = vpack.c.b16 %v832, %v829
  %v1010 = vpack.c.b16 %v833, %v830
  %v1011 = vpack.c.b16 %v834, %v831
  %v1012 = vpack.c.b16 %v838, %v835
  %v1013 = vpack.c.b16 %v839, %v836
  %v1014 = vpack.c.b16 %v840, %v837
  %v1015 = vpack.c.b16 %v844, %v841
  %v1016 = vpack.c.b16 %v845, %v842
  %v1017 = vpack.c.b16 %v846, %v843
  %v1018 = vpack.c.b16 %v850, %v847
  %v1019 = vpack.c.b16 %v851, %v848
  %v1020 = vpack.c.b16 %v852, %v849
  %v1021 = vpack.c.b16 %v856, %v853
  %v1022 = vpack.c.b16 %v857, %v854
  %v1023 = vpack.c.b16 %v858, %v855
  %v1024 = vpack.c.b16 %v862, %v859
  %v1025 = vpack.c.b16 %v863, %v860
  %v1026 = vpack.c.b16 %v864, %v861
  %v1027 = vpack.c.b16 %v868, %v865
  %v1028 = vpack.c.b16 %v869, %v866
  %v1029 = vpack.c.b16 %v870, %v867
  %v1030 = vpack.c.b16 %v874, %v871
  %v1031 = vpack.c.b16 %v875, %v872
  %v1032 = vpack.c.b16 %v876, %v873
  %v1033 = vpack.c.b16 %v880, %v877
  %v1034 = vpack.c.b16 %v881, %v878
  %v1035 = vpack.c.b16 %v882, %v879
  %v1036 = vpack.c.b16 %v886, %v883
  %v1037 = vpack.c.b16 %v887, %v884
  %v1038 = vpack.c.b16 %v888, %v885
  %v1039 = vpack.c.b16 %v892, %v889
  %v1040 = vpack.c.b16 %v893, %v890
  %v1041 = vpack.c.b16 %v894, %v891
  %v1042 = vpack.c.b16 %v898, %v895
  %v1043 = vpack.c.b16 %v899, %v896
  %v1044 = vpack.c.b16 %v900, %v897
  %v1045 = vpack.c.b16 %v904, %v901
  %v1046 = vpack.c.b16 %v905, %v902
  %v1047 = vpack.c.b16 %v906, %v903
  %v1048 = vpack.c.b16 %v910, %v907
  %v1049 = vpack.c.b16 %v911, %v908
  %v1050 = vpack.c.b16 %v912, %v909
  %v1051 = vpack.c.b16 %v916, %v913
  %v1052 = vpack.c.b16 %v917, %v914
  %v1053 = vpack.c.b16 %v918, %v915
  %v1054 = vpack.c.b16 %v922, %v919
  %v1055 = vpack.c.b16 %v923, %v920
  %v1056 = vpack.c.b16 %v924, %v921
  %v1057 = vpack.c.b16 %v928, %v925
  %v1058 = vpack.c.b16 %v929, %v926
  %v1059 = vpack.c.b16 %v930, %v927
  %v1060 = vpack.c.b16 %v934, %v931
  %v1061 = vpack.c.b16 %v935, %v932
  %v1062 = vpack.c.b16 %v936, %v933
  %v1063 = vpack.c.b16 %v940, %v937
  %v1064 = vpack.c.b16 %v941, %v938
  %v1065 = vpack.c.b16 %v942, %v939
  %v1066 = vpack.c.b16 %v946, %v943
  %v1067 = vpack.c.b16 %v947, %v944
  %v1068 = vpack.c.b16 %v948, %v945
  %1189 = vmatprep.subr.bf16.mxu0 %v950
  %1190 = vmatpush1.bf16.msra.mxu0 %v949
  %1191 = vmatprep.subr.bf16.mxu0 %v953
  %1192 = vmatpush1.bf16.msra.mxu0 %v952
  %1193 = vmatprep.subr.bf16.mxu0 %v956
  %1194 = vmatpush1.bf16.msra.mxu0 %v955
  %1195 = vmatprep.subr.bf16.mxu0 %v959
  %1196 = vmatpush1.bf16.msra.mxu0 %v958
  %1197 = vmatprep.subr.bf16.mxu0 %v962
  %1198 = vmatpush1.bf16.msra.mxu0 %v961
  %1199 = vmatprep.subr.bf16.mxu0 %v965
  %1200 = vmatpush1.bf16.msra.mxu0 %v964
  %1201 = vmatprep.subr.bf16.mxu0 %v968
  %1202 = vmatpush1.bf16.msra.mxu0 %v967
  %1203 = vmatprep.subr.bf16.mxu0 %v971
  %1204 = vmatpush1.bf16.msra.mxu0 %v970
  %1205 = vmatprep.subr.bf16.mxu0 %v974
  %1206 = vmatpush1.bf16.msra.mxu0 %v973
  %1207 = vmatprep.subr.bf16.mxu0 %v977
  %1208 = vmatpush1.bf16.msra.mxu0 %v976
  %1209 = vmatprep.subr.bf16.mxu0 %v980
  %1210 = vmatpush1.bf16.msra.mxu0 %v979
  %1211 = vmatprep.subr.bf16.mxu0 %v983
  %1212 = vmatpush1.bf16.msra.mxu0 %v982
  %1213 = vmatprep.subr.bf16.mxu0 %v986
  %1214 = vmatpush1.bf16.msra.mxu0 %v985
  %1215 = vmatprep.subr.bf16.mxu0 %v989
  %1216 = vmatpush1.bf16.msra.mxu0 %v988
  %1217 = vmatprep.subr.bf16.mxu0 %v992
  %1218 = vmatpush1.bf16.msra.mxu0 %v991
  %1219 = vmatprep.subr.bf16.mxu0 %v995
  %1220 = vmatpush1.bf16.msra.mxu0 %v994
  %1221 = vmatprep.mubr.bf16.mxu0 %v129
  %1222 = vmatmul.mubr.bf16.gmra.mrb[0].mxu0 %v77
  %v1223 = vpop.f32.mrb[0].mxu0
  %v1224 = vadd.f32 %v537, %v1223
  %v1225 = vpop.f32.mrb[0].mxu0
  %v1226 = vadd.f32 %v541, %v1225
  %v1227 = vpop.f32.mrb[0].mxu0
  %v1228 = vadd.f32 %v537, %v1227
  %v1229 = vpop.f32.mrb[0].mxu0
  %v1230 = vadd.f32 %v541, %v1229
  %1231 = vmatprep.mubr.bf16.mxu0 %v141
  %1232 = vmatmul.mubr.bf16.gmra.mrb[0].mxu0 %v78
  %v1233 = vpop.f32.mrb[0].mxu0
  %v1234 = vadd.f32 %v537, %v1233
  %v1235 = vpop.f32.mrb[0].mxu0
  %v1236 = vadd.f32 %v541, %v1235
  %v1237 = vpop.f32.mrb[0].mxu0
  %v1238 = vadd.f32 %v537, %v1237
  %v1239 = vpop.f32.mrb[0].mxu0
  %v1240 = vadd.f32 %v541, %v1239
  %1241 = vmatprep.mubr.bf16.mxu0 %v153
  %1242 = vmatmul.mubr.bf16.gmra.mrb[0].mxu0 %v79
  %v1243 = vpop.f32.mrb[0].mxu0
  %v1244 = vadd.f32 %v537, %v1243
  %v1245 = vpop.f32.mrb[0].mxu0
  %v1246 = vadd.f32 %v541, %v1245
  %v1247 = vpop.f32.mrb[0].mxu0
  %v1248 = vadd.f32 %v537, %v1247
  %v1249 = vpop.f32.mrb[0].mxu0
  %v1250 = vadd.f32 %v541, %v1249
  %1251 = vmatprep.mubr.bf16.mxu0 %v165
  %1252 = vmatmul.mubr.bf16.gmra.mrb[0].mxu0 %v80
  %v1253 = vpop.f32.mrb[0].mxu0
  %v1254 = vadd.f32 %v537, %v1253
  %v1255 = vpop.f32.mrb[0].mxu0
  %v1256 = vadd.f32 %v541, %v1255
  %v1257 = vpop.f32.mrb[0].mxu0
  %v1258 = vadd.f32 %v537, %v1257
  %v1259 = vpop.f32.mrb[0].mxu0
  %v1260 = vadd.f32 %v541, %v1259
  %1261 = vmatprep.mubr.bf16.mxu0 %v177
  %1262 = vmatmul.mubr.bf16.gmra.mrb[0].mxu0 %v81
  %v1263 = vpop.f32.mrb[0].mxu0
  %v1264 = vadd.f32 %v537, %v1263
  %v1265 = vpop.f32.mrb[0].mxu0
  %v1266 = vadd.f32 %v541, %v1265
  %v1267 = vpop.f32.mrb[0].mxu0
  %v1268 = vadd.f32 %v537, %v1267
  %v1269 = vpop.f32.mrb[0].mxu0
  %v1270 = vadd.f32 %v541, %v1269
  %1271 = vmatprep.mubr.bf16.mxu0 %v189
  %1272 = vmatmul.mubr.bf16.gmra.mrb[0].mxu0 %v82
  %v1273 = vpop.f32.mrb[0].mxu0
  %v1274 = vadd.f32 %v537, %v1273
  %v1275 = vpop.f32.mrb[0].mxu0
  %v1276 = vadd.f32 %v541, %v1275
  %v1277 = vpop.f32.mrb[0].mxu0
  %v1278 = vadd.f32 %v537, %v1277
  %v1279 = vpop.f32.mrb[0].mxu0
  %v1280 = vadd.f32 %v541, %v1279
  %1281 = vmatprep.mubr.bf16.mxu0 %v201
  %1282 = vmatmul.mubr.bf16.gmra.mrb[0].mxu0 %v83
  %v1283 = vpop.f32.mrb[0].mxu0
  %v1284 = vadd.f32 %v537, %v1283
  %v1285 = vpop.f32.mrb[0].mxu0
  %v1286 = vadd.f32 %v541, %v1285
  %v1287 = vpop.f32.mrb[0].mxu0
  %v1288 = vadd.f32 %v537, %v1287
  %v1289 = vpop.f32.mrb[0].mxu0
  %v1290 = vadd.f32 %v541, %v1289
  %1291 = vmatprep.mubr.bf16.mxu0 %v213
  %1292 = vmatmul.mubr.bf16.gmra.mrb[0].mxu0 %v84
  %v1293 = vpop.f32.mrb[0].mxu0
  %v1294 = vadd.f32 %v537, %v1293
  %v1295 = vpop.f32.mrb[0].mxu0
  %v1296 = vadd.f32 %v541, %v1295
  %v1297 = vpop.f32.mrb[0].mxu0
  %v1298 = vadd.f32 %v537, %v1297
  %v1299 = vpop.f32.mrb[0].mxu0
  %v1300 = vadd.f32 %v541, %v1299
  %1301 = vdwg.mxu0
  %1302 = vmatprep.subr.bf16.mxu0 %v998
  %1303 = vmatpush1.bf16.msra.mxu0 %v997
  %1304 = vmatprep.subr.bf16.mxu0 %v1001
  %1305 = vmatpush1.bf16.msra.mxu0 %v1000
  %1306 = vmatprep.subr.bf16.mxu0 %v1004
  %1307 = vmatpush1.bf16.msra.mxu0 %v1003
  %1308 = vmatprep.subr.bf16.mxu0 %v1007
  %1309 = vmatpush1.bf16.msra.mxu0 %v1006
  %1310 = vmatprep.subr.bf16.mxu0 %v1010
  %1311 = vmatpush1.bf16.msra.mxu0 %v1009
  %1312 = vmatprep.subr.bf16.mxu0 %v1013
  %1313 = vmatpush1.bf16.msra.mxu0 %v1012
  %1314 = vmatprep.subr.bf16.mxu0 %v1016
  %1315 = vmatpush1.bf16.msra.mxu0 %v1015
  %1316 = vmatprep.subr.bf16.mxu0 %v1019
  %1317 = vmatpush1.bf16.msra.mxu0 %v1018
  %1318 = vmatprep.subr.bf16.mxu0 %v1022
  %1319 = vmatpush1.bf16.msra.mxu0 %v1021
  %1320 = vmatprep.subr.bf16.mxu0 %v1025
  %1321 = vmatpush1.bf16.msra.mxu0 %v1024
  %1322 = vmatprep.subr.bf16.mxu0 %v1028
  %1323 = vmatpush1.bf16.msra.mxu0 %v1027
  %1324 = vmatprep.subr.bf16.mxu0 %v1031
  %1325 = vmatpush1.bf16.msra.mxu0 %v1030
  %1326 = vmatprep.subr.bf16.mxu0 %v1034
  %1327 = vmatpush1.bf16.msra.mxu0 %v1033
  %1328 = vmatprep.subr.bf16.mxu0 %v1037
  %1329 = vmatpush1.bf16.msra.mxu0 %v1036
  %1330 = vmatprep.subr.bf16.mxu0 %v1040
  %1331 = vmatpush1.bf16.msra.mxu0 %v1039
  %1332 = vmatprep.subr.bf16.mxu0 %v1043
  %1333 = vmatpush1.bf16.msra.mxu0 %v1042
  %1334 = vmatprep.mubr.bf16.mxu0 %v264
  %1335 = vmatmul.mubr.bf16.gmra.mrb[0].mxu0 %v225
  %v1336 = vpop.f32.mrb[0].mxu0
  %v1337 = vadd.f32 %v1224, %v1336
  %v1338 = vpop.f32.mrb[0].mxu0
  %v1339 = vadd.f32 %v1226, %v1338
  %v1340 = vpop.f32.mrb[0].mxu0
  %v1341 = vadd.f32 %v1228, %v1340
  %v1342 = vpop.f32.mrb[0].mxu0
  %v1343 = vadd.f32 %v1230, %v1342
  %1344 = vmatprep.mubr.bf16.mxu0 %v273
  %1345 = vmatmul.mubr.bf16.gmra.mrb[0].mxu0 %v228
  %v1346 = vpop.f32.mrb[0].mxu0
  %v1347 = vadd.f32 %v1234, %v1346
  %v1348 = vpop.f32.mrb[0].mxu0
  %v1349 = vadd.f32 %v1236, %v1348
  %v1350 = vpop.f32.mrb[0].mxu0
  %v1351 = vadd.f32 %v1238, %v1350
  %v1352 = vpop.f32.mrb[0].mxu0
  %v1353 = vadd.f32 %v1240, %v1352
  %1354 = vmatprep.mubr.bf16.mxu0 %v282
  %1355 = vmatmul.mubr.bf16.gmra.mrb[0].mxu0 %v231
  %v1356 = vpop.f32.mrb[0].mxu0
  %v1357 = vadd.f32 %v1244, %v1356
  %v1358 = vpop.f32.mrb[0].mxu0
  %v1359 = vadd.f32 %v1246, %v1358
  %v1360 = vpop.f32.mrb[0].mxu0
  %v1361 = vadd.f32 %v1248, %v1360
  %v1362 = vpop.f32.mrb[0].mxu0
  %v1363 = vadd.f32 %v1250, %v1362
  %1364 = vmatprep.mubr.bf16.mxu0 %v291
  %1365 = vmatmul.mubr.bf16.gmra.mrb[0].mxu0 %v234
  %v1366 = vpop.f32.mrb[0].mxu0
  %v1367 = vadd.f32 %v1254, %v1366
  %v1368 = vpop.f32.mrb[0].mxu0
  %v1369 = vadd.f32 %v1256, %v1368
  %v1370 = vpop.f32.mrb[0].mxu0
  %v1371 = vadd.f32 %v1258, %v1370
  %v1372 = vpop.f32.mrb[0].mxu0
  %v1373 = vadd.f32 %v1260, %v1372
  %1374 = vmatprep.mubr.bf16.mxu0 %v300
  %1375 = vmatmul.mubr.bf16.gmra.mrb[0].mxu0 %v237
  %v1376 = vpop.f32.mrb[0].mxu0
  %v1377 = vadd.f32 %v1264, %v1376
  %v1378 = vpop.f32.mrb[0].mxu0
  %v1379 = vadd.f32 %v1266, %v1378
  %v1380 = vpop.f32.mrb[0].mxu0
  %v1381 = vadd.f32 %v1268, %v1380
  %v1382 = vpop.f32.mrb[0].mxu0
  %v1383 = vadd.f32 %v1270, %v1382
  %1384 = vmatprep.mubr.bf16.mxu0 %v309
  %1385 = vmatmul.mubr.bf16.gmra.mrb[0].mxu0 %v240
  %v1386 = vpop.f32.mrb[0].mxu0
  %v1387 = vadd.f32 %v1274, %v1386
  %v1388 = vpop.f32.mrb[0].mxu0
  %v1389 = vadd.f32 %v1276, %v1388
  %v1390 = vpop.f32.mrb[0].mxu0
  %v1391 = vadd.f32 %v1278, %v1390
  %v1392 = vpop.f32.mrb[0].mxu0
  %v1393 = vadd.f32 %v1280, %v1392
  %1394 = vmatprep.mubr.bf16.mxu0 %v318
  %1395 = vmatmul.mubr.bf16.gmra.mrb[0].mxu0 %v243
  %v1396 = vpop.f32.mrb[0].mxu0
  %v1397 = vadd.f32 %v1284, %v1396
  %v1398 = vpop.f32.mrb[0].mxu0
  %v1399 = vadd.f32 %v1286, %v1398
  %v1400 = vpop.f32.mrb[0].mxu0
  %v1401 = vadd.f32 %v1288, %v1400
  %v1402 = vpop.f32.mrb[0].mxu0
  %v1403 = vadd.f32 %v1290, %v1402
  %1404 = vmatprep.mubr.bf16.mxu0 %v327
  %1405 = vmatmul.mubr.bf16.gmra.mrb[0].mxu0 %v246
  %v1406 = vpop.f32.mrb[0].mxu0
  %v1407 = vadd.f32 %v1294, %v1406
  %v1408 = vpop.f32.mrb[0].mxu0
  %v1409 = vadd.f32 %v1296, %v1408
  %v1410 = vpop.f32.mrb[0].mxu0
  %v1411 = vadd.f32 %v1298, %v1410
  %v1412 = vpop.f32.mrb[0].mxu0
  %v1413 = vadd.f32 %v1300, %v1412
  %1414 = vdwg.mxu0
  %1415 = vmatprep.subr.bf16.mxu0 %v1046
  %1416 = vmatpush1.bf16.msra.mxu0 %v1045
  %1417 = vmatprep.subr.bf16.mxu0 %v1049
  %1418 = vmatpush1.bf16.msra.mxu0 %v1048
  %1419 = vmatprep.subr.bf16.mxu0 %v1052
  %1420 = vmatpush1.bf16.msra.mxu0 %v1051
  %1421 = vmatprep.subr.bf16.mxu0 %v1055
  %1422 = vmatpush1.bf16.msra.mxu0 %v1054
  %1423 = vmatprep.subr.bf16.mxu0 %v1058
  %1424 = vmatpush1.bf16.msra.mxu0 %v1057
  %1425 = vmatprep.subr.bf16.mxu0 %v1061
  %1426 = vmatpush1.bf16.msra.mxu0 %v1060
  %1427 = vmatprep.subr.bf16.mxu0 %v1064
  %1428 = vmatpush1.bf16.msra.mxu0 %v1063
  %1429 = vmatprep.subr.bf16.mxu0 %v1067
  %1430 = vmatpush1.bf16.msra.mxu0 %v1066
  %1431 = vmatprep.subr.bf16.mxu0 0
  %1432 = vmatpush1.bf16.msra.mxu0 0
  %1433 = vmatprep.subr.bf16.mxu0 0
  %1434 = vmatpush1.bf16.msra.mxu0 0
  %1435 = vmatprep.subr.bf16.mxu0 0
  %1436 = vmatpush1.bf16.msra.mxu0 0
  %1437 = vmatprep.subr.bf16.mxu0 0
  %1438 = vmatpush1.bf16.msra.mxu0 0
  %1439 = vmatprep.subr.bf16.mxu0 0
  %1440 = vmatpush1.bf16.msra.mxu0 0
  %1441 = vmatprep.subr.bf16.mxu0 0
  %1442 = vmatpush1.bf16.msra.mxu0 0
  %1443 = vmatprep.subr.bf16.mxu0 0
  %1444 = vmatpush1.bf16.msra.mxu0 0
  %1445 = vmatprep.subr.bf16.mxu0 0
  %1446 = vmatpush1.bf16.msra.mxu0 0
  %1447 = vmatprep.mubr.bf16.mxu0 0
  %1448 = vmatmul.mubr.bf16.gmra.mrb[0].mxu0 %v339
  %v1449 = vpop.f32.mrb[0].mxu0
  %v1450 = vadd.f32 %v1337, %v1449
  %v1451 = vpop.f32.mrb[0].mxu0
  %v1452 = vadd.f32 %v1339, %v1451
  %v1453 = vpop.f32.mrb[0].mxu0
  %v1454 = vadd.f32 %v1341, %v1453
  %v1455 = vpop.f32.mrb[0].mxu0
  %v1456 = vadd.f32 %v1343, %v1455
  %1457 = vmatprep.mubr.bf16.mxu0 0
  %1458 = vmatmul.mubr.bf16.gmra.mrb[0].mxu0 %v342
  %v1459 = vpop.f32.mrb[0].mxu0
  %v1460 = vadd.f32 %v1347, %v1459
  %v1461 = vpop.f32.mrb[0].mxu0
  %v1462 = vadd.f32 %v1349, %v1461
  %v1463 = vpop.f32.mrb[0].mxu0
  %v1464 = vadd.f32 %v1351, %v1463
  %v1465 = vpop.f32.mrb[0].mxu0
  %v1466 = vadd.f32 %v1353, %v1465
  %1467 = vmatprep.mubr.bf16.mxu0 0
  %1468 = vmatmul.mubr.bf16.gmra.mrb[0].mxu0 %v345
  %v1469 = vpop.f32.mrb[0].mxu0
  %v1470 = vadd.f32 %v1357, %v1469
  %v1471 = vpop.f32.mrb[0].mxu0
  %v1472 = vadd.f32 %v1359, %v1471
  %v1473 = vpop.f32.mrb[0].mxu0
  %v1474 = vadd.f32 %v1361, %v1473
  %v1475 = vpop.f32.mrb[0].mxu0
  %v1476 = vadd.f32 %v1363, %v1475
  %1477 = vmatprep.mubr.bf16.mxu0 0
  %1478 = vmatmul.mubr.bf16.gmra.mrb[0].mxu0 %v348
  %v1479 = vpop.f32.mrb[0].mxu0
  %v1480 = vadd.f32 %v1367, %v1479
  %v1481 = vpop.f32.mrb[0].mxu0
  %v1482 = vadd.f32 %v1369, %v1481
  %v1483 = vpop.f32.mrb[0].mxu0
  %v1484 = vadd.f32 %v1371, %v1483
  %v1485 = vpop.f32.mrb[0].mxu0
  %v1486 = vadd.f32 %v1373, %v1485
  %1487 = vmatprep.mubr.bf16.mxu0 0
  %1488 = vmatmul.mubr.bf16.gmra.mrb[0].mxu0 %v351
  %v1489 = vpop.f32.mrb[0].mxu0
  %v1490 = vadd.f32 %v1377, %v1489
  %v1491 = vpop.f32.mrb[0].mxu0
  %v1492 = vadd.f32 %v1379, %v1491
  %v1493 = vpop.f32.mrb[0].mxu0
  %v1494 = vadd.f32 %v1381, %v1493
  %v1495 = vpop.f32.mrb[0].mxu0
  %v1496 = vadd.f32 %v1383, %v1495
  %1497 = vmatprep.mubr.bf16.mxu0 0
  %1498 = vmatmul.mubr.bf16.gmra.mrb[0].mxu0 %v354
  %v1499 = vpop.f32.mrb[0].mxu0
  %v1500 = vadd.f32 %v1387, %v1499
  %v1501 = vpop.f32.mrb[0].mxu0
  %v1502 = vadd.f32 %v1389, %v1501
  %v1503 = vpop.f32.mrb[0].mxu0
  %v1504 = vadd.f32 %v1391, %v1503
  %v1505 = vpop.f32.mrb[0].mxu0
  %v1506 = vadd.f32 %v1393, %v1505
  %1507 = vmatprep.mubr.bf16.mxu0 0
  %1508 = vmatmul.mubr.bf16.gmra.mrb[0].mxu0 %v357
  %v1509 = vpop.f32.mrb[0].mxu0
  %v1510 = vadd.f32 %v1397, %v1509
  %v1511 = vpop.f32.mrb[0].mxu0
  %v1512 = vadd.f32 %v1399, %v1511
  %v1513 = vpop.f32.mrb[0].mxu0
  %v1514 = vadd.f32 %v1401, %v1513
  %v1515 = vpop.f32.mrb[0].mxu0
  %v1516 = vadd.f32 %v1403, %v1515
  %1517 = vmatprep.mubr.bf16.mxu0 0
  %1518 = vmatmul.mubr.bf16.gmra.mrb[0].mxu0 %v360
  %v1519 = vpop.f32.mrb[0].mxu0
  %v1520 = vadd.f32 %v1407, %v1519
  %v1521 = vpop.f32.mrb[0].mxu0
  %v1522 = vadd.f32 %v1409, %v1521
  %v1523 = vpop.f32.mrb[0].mxu0
  %v1524 = vadd.f32 %v1411, %v1523
  %v1525 = vpop.f32.mrb[0].mxu0
  %v1526 = vadd.f32 %v1413, %v1525
  %1527 = vdwg.mxu0
  %1528 = vmatprep.subr.bf16.mxu0 0
  %1529 = vmatpush1.bf16.msra.mxu0 %v951
  %1530 = vmatprep.subr.bf16.mxu0 0
  %1531 = vmatpush1.bf16.msra.mxu0 %v954
  %1532 = vmatprep.subr.bf16.mxu0 0
  %1533 = vmatpush1.bf16.msra.mxu0 %v957
  %1534 = vmatprep.subr.bf16.mxu0 0
  %1535 = vmatpush1.bf16.msra.mxu0 %v960
  %1536 = vmatprep.subr.bf16.mxu0 0
  %1537 = vmatpush1.bf16.msra.mxu0 %v963
  %1538 = vmatprep.subr.bf16.mxu0 0
  %1539 = vmatpush1.bf16.msra.mxu0 %v966
  %1540 = vmatprep.subr.bf16.mxu0 0
  %1541 = vmatpush1.bf16.msra.mxu0 %v969
  %1542 = vmatprep.subr.bf16.mxu0 0
  %1543 = vmatpush1.bf16.msra.mxu0 %v972
  %1544 = vmatprep.subr.bf16.mxu0 0
  %1545 = vmatpush1.bf16.msra.mxu0 %v975
  %1546 = vmatprep.subr.bf16.mxu0 0
  %1547 = vmatpush1.bf16.msra.mxu0 %v978
  %1548 = vmatprep.subr.bf16.mxu0 0
  %1549 = vmatpush1.bf16.msra.mxu0 %v981
  %1550 = vmatprep.subr.bf16.mxu0 0
  %1551 = vmatpush1.bf16.msra.mxu0 %v984
  %1552 = vmatprep.subr.bf16.mxu0 0
  %1553 = vmatpush1.bf16.msra.mxu0 %v987
  %1554 = vmatprep.subr.bf16.mxu0 0
  %1555 = vmatpush1.bf16.msra.mxu0 %v990
  %1556 = vmatprep.subr.bf16.mxu0 0
  %1557 = vmatpush1.bf16.msra.mxu0 %v993
  %1558 = vmatprep.subr.bf16.mxu0 0
  %1559 = vmatpush1.bf16.msra.mxu0 %v996
  %1560 = vmatprep.mubr.bf16.mxu0 %v129
  %1561 = vmatmul.mubr.bf16.gmra.mrb[0].mxu0 %v77
  %v1562 = vpop.f32.mrb[0].mxu0
  %v1563 = vadd.f32 %v545, %v1562
  %v1564 = vpop.f32.mrb[0].mxu0
  %v1565 = vpop.f32.mrb[0].mxu0
  %v1566 = vadd.f32 %v545, %v1565
  %v1567 = vpop.f32.mrb[0].mxu0
  %1568 = vmatprep.mubr.bf16.mxu0 %v141
  %1569 = vmatmul.mubr.bf16.gmra.mrb[0].mxu0 %v78
  %v1570 = vpop.f32.mrb[0].mxu0
  %v1571 = vadd.f32 %v545, %v1570
  %v1572 = vpop.f32.mrb[0].mxu0
  %v1573 = vpop.f32.mrb[0].mxu0
  %v1574 = vadd.f32 %v545, %v1573
  %v1575 = vpop.f32.mrb[0].mxu0
  %1576 = vmatprep.mubr.bf16.mxu0 %v153
  %1577 = vmatmul.mubr.bf16.gmra.mrb[0].mxu0 %v79
  %v1578 = vpop.f32.mrb[0].mxu0
  %v1579 = vadd.f32 %v545, %v1578
  %v1580 = vpop.f32.mrb[0].mxu0
  %v1581 = vpop.f32.mrb[0].mxu0
  %v1582 = vadd.f32 %v545, %v1581
  %v1583 = vpop.f32.mrb[0].mxu0
  %1584 = vmatprep.mubr.bf16.mxu0 %v165
  %1585 = vmatmul.mubr.bf16.gmra.mrb[0].mxu0 %v80
  %v1586 = vpop.f32.mrb[0].mxu0
  %v1587 = vadd.f32 %v545, %v1586
  %v1588 = vpop.f32.mrb[0].mxu0
  %v1589 = vpop.f32.mrb[0].mxu0
  %v1590 = vadd.f32 %v545, %v1589
  %v1591 = vpop.f32.mrb[0].mxu0
  %1592 = vmatprep.mubr.bf16.mxu0 %v177
  %1593 = vmatmul.mubr.bf16.gmra.mrb[0].mxu0 %v81
  %v1594 = vpop.f32.mrb[0].mxu0
  %v1595 = vadd.f32 %v545, %v1594
  %v1596 = vpop.f32.mrb[0].mxu0
  %v1597 = vpop.f32.mrb[0].mxu0
  %v1598 = vadd.f32 %v545, %v1597
  %v1599 = vpop.f32.mrb[0].mxu0
  %1600 = vmatprep.mubr.bf16.mxu0 %v189
  %1601 = vmatmul.mubr.bf16.gmra.mrb[0].mxu0 %v82
  %v1602 = vpop.f32.mrb[0].mxu0
  %v1603 = vadd.f32 %v545, %v1602
  %v1604 = vpop.f32.mrb[0].mxu0
  %v1605 = vpop.f32.mrb[0].mxu0
  %v1606 = vadd.f32 %v545, %v1605
  %v1607 = vpop.f32.mrb[0].mxu0
  %1608 = vmatprep.mubr.bf16.mxu0 %v201
  %1609 = vmatmul.mubr.bf16.gmra.mrb[0].mxu0 %v83
  %v1610 = vpop.f32.mrb[0].mxu0
  %v1611 = vadd.f32 %v545, %v1610
  %v1612 = vpop.f32.mrb[0].mxu0
  %v1613 = vpop.f32.mrb[0].mxu0
  %v1614 = vadd.f32 %v545, %v1613
  %v1615 = vpop.f32.mrb[0].mxu0
  %1616 = vmatprep.mubr.bf16.mxu0 %v213
  %1617 = vmatmul.mubr.bf16.gmra.mrb[0].mxu0 %v84
  %v1618 = vpop.f32.mrb[0].mxu0
  %v1619 = vadd.f32 %v545, %v1618
  %v1620 = vpop.f32.mrb[0].mxu0
  %v1621 = vpop.f32.mrb[0].mxu0
  %v1622 = vadd.f32 %v545, %v1621
  %v1623 = vpop.f32.mrb[0].mxu0
  %1624 = vdwg.mxu0
  %1625 = vmatprep.subr.bf16.mxu0 0
  %1626 = vmatpush1.bf16.msra.mxu0 %v999
  %1627 = vmatprep.subr.bf16.mxu0 0
  %1628 = vmatpush1.bf16.msra.mxu0 %v1002
  %1629 = vmatprep.subr.bf16.mxu0 0
  %1630 = vmatpush1.bf16.msra.mxu0 %v1005
  %1631 = vmatprep.subr.bf16.mxu0 0
  %1632 = vmatpush1.bf16.msra.mxu0 %v1008
  %1633 = vmatprep.subr.bf16.mxu0 0
  %1634 = vmatpush1.bf16.msra.mxu0 %v1011
  %1635 = vmatprep.subr.bf16.mxu0 0
  %1636 = vmatpush1.bf16.msra.mxu0 %v1014
  %1637 = vmatprep.subr.bf16.mxu0 0
  %1638 = vmatpush1.bf16.msra.mxu0 %v1017
  %1639 = vmatprep.subr.bf16.mxu0 0
  %1640 = vmatpush1.bf16.msra.mxu0 %v1020
  %1641 = vmatprep.subr.bf16.mxu0 0
  %1642 = vmatpush1.bf16.msra.mxu0 %v1023
  %1643 = vmatprep.subr.bf16.mxu0 0
  %1644 = vmatpush1.bf16.msra.mxu0 %v1026
  %1645 = vmatprep.subr.bf16.mxu0 0
  %1646 = vmatpush1.bf16.msra.mxu0 %v1029
  %1647 = vmatprep.subr.bf16.mxu0 0
  %1648 = vmatpush1.bf16.msra.mxu0 %v1032
  %1649 = vmatprep.subr.bf16.mxu0 0
  %1650 = vmatpush1.bf16.msra.mxu0 %v1035
  %1651 = vmatprep.subr.bf16.mxu0 0
  %1652 = vmatpush1.bf16.msra.mxu0 %v1038
  %1653 = vmatprep.subr.bf16.mxu0 0
  %1654 = vmatpush1.bf16.msra.mxu0 %v1041
  %1655 = vmatprep.subr.bf16.mxu0 0
  %1656 = vmatpush1.bf16.msra.mxu0 %v1044
  %1657 = vmatprep.mubr.bf16.mxu0 %v264
  %1658 = vmatmul.mubr.bf16.gmra.mrb[0].mxu0 %v225
  %v1659 = vpop.f32.mrb[0].mxu0
  %v1660 = vadd.f32 %v1563, %v1659
  %v1661 = vpop.f32.mrb[0].mxu0
  %v1662 = vpop.f32.mrb[0].mxu0
  %v1663 = vadd.f32 %v1566, %v1662
  %v1664 = vpop.f32.mrb[0].mxu0
  %1665 = vmatprep.mubr.bf16.mxu0 %v273
  %1666 = vmatmul.mubr.bf16.gmra.mrb[0].mxu0 %v228
  %v1667 = vpop.f32.mrb[0].mxu0
  %v1668 = vadd.f32 %v1571, %v1667
  %v1669 = vpop.f32.mrb[0].mxu0
  %v1670 = vpop.f32.mrb[0].mxu0
  %v1671 = vadd.f32 %v1574, %v1670
  %v1672 = vpop.f32.mrb[0].mxu0
  %1673 = vmatprep.mubr.bf16.mxu0 %v282
  %1674 = vmatmul.mubr.bf16.gmra.mrb[0].mxu0 %v231
  %v1675 = vpop.f32.mrb[0].mxu0
  %v1676 = vadd.f32 %v1579, %v1675
  %v1677 = vpop.f32.mrb[0].mxu0
  %v1678 = vpop.f32.mrb[0].mxu0
  %v1679 = vadd.f32 %v1582, %v1678
  %v1680 = vpop.f32.mrb[0].mxu0
  %1681 = vmatprep.mubr.bf16.mxu0 %v291
  %1682 = vmatmul.mubr.bf16.gmra.mrb[0].mxu0 %v234
  %v1683 = vpop.f32.mrb[0].mxu0
  %v1684 = vadd.f32 %v1587, %v1683
  %v1685 = vpop.f32.mrb[0].mxu0
  %v1686 = vpop.f32.mrb[0].mxu0
  %v1687 = vadd.f32 %v1590, %v1686
  %v1688 = vpop.f32.mrb[0].mxu0
  %1689 = vmatprep.mubr.bf16.mxu0 %v300
  %1690 = vmatmul.mubr.bf16.gmra.mrb[0].mxu0 %v237
  %v1691 = vpop.f32.mrb[0].mxu0
  %v1692 = vadd.f32 %v1595, %v1691
  %v1693 = vpop.f32.mrb[0].mxu0
  %v1694 = vpop.f32.mrb[0].mxu0
  %v1695 = vadd.f32 %v1598, %v1694
  %v1696 = vpop.f32.mrb[0].mxu0
  %1697 = vmatprep.mubr.bf16.mxu0 %v309
  %1698 = vmatmul.mubr.bf16.gmra.mrb[0].mxu0 %v240
  %v1699 = vpop.f32.mrb[0].mxu0
  %v1700 = vadd.f32 %v1603, %v1699
  %v1701 = vpop.f32.mrb[0].mxu0
  %v1702 = vpop.f32.mrb[0].mxu0
  %v1703 = vadd.f32 %v1606, %v1702
  %v1704 = vpop.f32.mrb[0].mxu0
  %1705 = vmatprep.mubr.bf16.mxu0 %v318
  %1706 = vmatmul.mubr.bf16.gmra.mrb[0].mxu0 %v243
  %v1707 = vpop.f32.mrb[0].mxu0
  %v1708 = vadd.f32 %v1611, %v1707
  %v1709 = vpop.f32.mrb[0].mxu0
  %v1710 = vpop.f32.mrb[0].mxu0
  %v1711 = vadd.f32 %v1614, %v1710
  %v1712 = vpop.f32.mrb[0].mxu0
  %1713 = vmatprep.mubr.bf16.mxu0 %v327
  %1714 = vmatmul.mubr.bf16.gmra.mrb[0].mxu0 %v246
  %v1715 = vpop.f32.mrb[0].mxu0
  %v1716 = vadd.f32 %v1619, %v1715
  %v1717 = vpop.f32.mrb[0].mxu0
  %v1718 = vpop.f32.mrb[0].mxu0
  %v1719 = vadd.f32 %v1622, %v1718
  %v1720 = vpop.f32.mrb[0].mxu0
  %1721 = vdwg.mxu0
  %1722 = vmatprep.subr.bf16.mxu0 0
  %1723 = vmatpush1.bf16.msra.mxu0 %v1047
  %1724 = vmatprep.subr.bf16.mxu0 0
  %1725 = vmatpush1.bf16.msra.mxu0 %v1050
  %1726 = vmatprep.subr.bf16.mxu0 0
  %1727 = vmatpush1.bf16.msra.mxu0 %v1053
  %1728 = vmatprep.subr.bf16.mxu0 0
  %1729 = vmatpush1.bf16.msra.mxu0 %v1056
  %1730 = vmatprep.subr.bf16.mxu0 0
  %1731 = vmatpush1.bf16.msra.mxu0 %v1059
  %1732 = vmatprep.subr.bf16.mxu0 0
  %1733 = vmatpush1.bf16.msra.mxu0 %v1062
  %1734 = vmatprep.subr.bf16.mxu0 0
  %1735 = vmatpush1.bf16.msra.mxu0 %v1065
  %1736 = vmatprep.subr.bf16.mxu0 0
  %1737 = vmatpush1.bf16.msra.mxu0 %v1068
  %1738 = vmatprep.subr.bf16.mxu0 0
  %1739 = vmatpush1.bf16.msra.mxu0 0
  %1740 = vmatprep.subr.bf16.mxu0 0
  %1741 = vmatpush1.bf16.msra.mxu0 0
  %1742 = vmatprep.subr.bf16.mxu0 0
  %1743 = vmatpush1.bf16.msra.mxu0 0
  %1744 = vmatprep.subr.bf16.mxu0 0
  %1745 = vmatpush1.bf16.msra.mxu0 0
  %1746 = vmatprep.subr.bf16.mxu0 0
  %1747 = vmatpush1.bf16.msra.mxu0 0
  %1748 = vmatprep.subr.bf16.mxu0 0
  %1749 = vmatpush1.bf16.msra.mxu0 0
  %1750 = vmatprep.subr.bf16.mxu0 0
  %1751 = vmatpush1.bf16.msra.mxu0 0
  %1752 = vmatprep.subr.bf16.mxu0 0
  %1753 = vmatpush1.bf16.msra.mxu0 0
  %1754 = vmatprep.mubr.bf16.mxu0 0
  %1755 = vmatmul.mubr.bf16.gmra.mrb[0].mxu0 %v339
  %v1756 = vpop.f32.mrb[0].mxu0
  %v1757 = vadd.f32 %v1660, %v1756
  %v1758 = vpop.f32.mrb[0].mxu0
  %v1759 = vpop.f32.mrb[0].mxu0
  %v1760 = vadd.f32 %v1663, %v1759
  %v1761 = vpop.f32.mrb[0].mxu0
  %1762 = vmatprep.mubr.bf16.mxu0 0
  %1763 = vmatmul.mubr.bf16.gmra.mrb[0].mxu0 %v342
  %v1764 = vpop.f32.mrb[0].mxu0
  %v1765 = vadd.f32 %v1668, %v1764
  %v1766 = vpop.f32.mrb[0].mxu0
  %v1767 = vpop.f32.mrb[0].mxu0
  %v1768 = vadd.f32 %v1671, %v1767
  %v1769 = vpop.f32.mrb[0].mxu0
  %1770 = vmatprep.mubr.bf16.mxu0 0
  %1771 = vmatmul.mubr.bf16.gmra.mrb[0].mxu0 %v345
  %v1772 = vpop.f32.mrb[0].mxu0
  %v1773 = vadd.f32 %v1676, %v1772
  %v1774 = vpop.f32.mrb[0].mxu0
  %v1775 = vpop.f32.mrb[0].mxu0
  %v1776 = vadd.f32 %v1679, %v1775
  %v1777 = vpop.f32.mrb[0].mxu0
  %1778 = vmatprep.mubr.bf16.mxu0 0
  %1779 = vmatmul.mubr.bf16.gmra.mrb[0].mxu0 %v348
  %v1780 = vpop.f32.mrb[0].mxu0
  %v1781 = vadd.f32 %v1684, %v1780
  %v1782 = vpop.f32.mrb[0].mxu0
  %v1783 = vpop.f32.mrb[0].mxu0
  %v1784 = vadd.f32 %v1687, %v1783
  %v1785 = vpop.f32.mrb[0].mxu0
  %1786 = vmatprep.mubr.bf16.mxu0 0
  %1787 = vmatmul.mubr.bf16.gmra.mrb[0].mxu0 %v351
  %v1788 = vpop.f32.mrb[0].mxu0
  %v1789 = vadd.f32 %v1692, %v1788
  %v1790 = vpop.f32.mrb[0].mxu0
  %v1791 = vpop.f32.mrb[0].mxu0
  %v1792 = vadd.f32 %v1695, %v1791
  %v1793 = vpop.f32.mrb[0].mxu0
  %1794 = vmatprep.mubr.bf16.mxu0 0
  %1795 = vmatmul.mubr.bf16.gmra.mrb[0].mxu0 %v354
  %v1796 = vpop.f32.mrb[0].mxu0
  %v1797 = vadd.f32 %v1700, %v1796
  %v1798 = vpop.f32.mrb[0].mxu0
  %v1799 = vpop.f32.mrb[0].mxu0
  %v1800 = vadd.f32 %v1703, %v1799
  %v1801 = vpop.f32.mrb[0].mxu0
  %1802 = vmatprep.mubr.bf16.mxu0 0
  %1803 = vmatmul.mubr.bf16.gmra.mrb[0].mxu0 %v357
  %v1804 = vpop.f32.mrb[0].mxu0
  %v1805 = vadd.f32 %v1708, %v1804
  %v1806 = vpop.f32.mrb[0].mxu0
  %v1807 = vpop.f32.mrb[0].mxu0
  %v1808 = vadd.f32 %v1711, %v1807
  %v1809 = vpop.f32.mrb[0].mxu0
  %1810 = vmatprep.mubr.bf16.mxu0 0
  %1811 = vmatmul.mubr.bf16.gmra.mrb[0].mxu0 %v360
  %v1812 = vpop.f32.mrb[0].mxu0
  %v1813 = vadd.f32 %v1716, %v1812
  %v1814 = vpop.f32.mrb[0].mxu0
  %v1815 = vpop.f32.mrb[0].mxu0
  %v1816 = vadd.f32 %v1719, %v1815
  %v1817 = vpop.f32.mrb[0].mxu0
  %1818 = vdwg.mxu0
  %v1819 = vmax.f32 %v1450, 0.0
  %v1820 = vmax.f32 %v1452, 0.0
  %v1821 = vmax.f32 %v1757, 0.0
  %v1822 = vmax.f32 %v1454, 0.0
  %v1823 = vmax.f32 %v1456, 0.0
  %v1824 = vmax.f32 %v1760, 0.0
  %v1825 = vmax.f32 %v1460, 0.0
  %v1826 = vmax.f32 %v1462, 0.0
  %v1827 = vmax.f32 %v1765, 0.0
  %v1828 = vmax.f32 %v1464, 0.0
  %v1829 = vmax.f32 %v1466, 0.0
  %v1830 = vmax.f32 %v1768, 0.0
  %v1831 = vmax.f32 %v1470, 0.0
  %v1832 = vmax.f32 %v1472, 0.0
  %v1833 = vmax.f32 %v1773, 0.0
  %v1834 = vmax.f32 %v1474, 0.0
  %v1835 = vmax.f32 %v1476, 0.0
  %v1836 = vmax.f32 %v1776, 0.0
  %v1837 = vmax.f32 %v1480, 0.0
  %v1838 = vmax.f32 %v1482, 0.0
  %v1839 = vmax.f32 %v1781, 0.0
  %v1840 = vmax.f32 %v1484, 0.0
  %v1841 = vmax.f32 %v1486, 0.0
  %v1842 = vmax.f32 %v1784, 0.0
  %v1843 = vmax.f32 %v1490, 0.0
  %v1844 = vmax.f32 %v1492, 0.0
  %v1845 = vmax.f32 %v1789, 0.0
  %v1846 = vmax.f32 %v1494, 0.0
  %v1847 = vmax.f32 %v1496, 0.0
  %v1848 = vmax.f32 %v1792, 0.0
  %v1849 = vmax.f32 %v1500, 0.0
  %v1850 = vmax.f32 %v1502, 0.0
  %v1851 = vmax.f32 %v1797, 0.0
  %v1852 = vmax.f32 %v1504, 0.0
  %v1853 = vmax.f32 %v1506, 0.0
  %v1854 = vmax.f32 %v1800, 0.0
  %v1855 = vmax.f32 %v1510, 0.0
  %v1856 = vmax.f32 %v1512, 0.0
  %v1857 = vmax.f32 %v1805, 0.0
  %v1858 = vmax.f32 %v1514, 0.0
  %v1859 = vmax.f32 %v1516, 0.0
  %v1860 = vmax.f32 %v1808, 0.0
  %v1861 = vmax.f32 %v1520, 0.0
  %v1862 = vmax.f32 %v1522, 0.0
  %v1863 = vmax.f32 %v1813, 0.0
  %v1864 = vmax.f32 %v1524, 0.0
  %v1865 = vmax.f32 %v1526, 0.0
  %v1866 = vmax.f32 %v1816, 0.0
  %v1867 = vlaneseq
  %v1868 = vand.u32 %v1867, 127
  %v1869 = vadd.s32 %v1868, 128
  %v1870 = vadd.s32 %v1868, 256
  %vm1871 = vcmp.lt.s32.totalorder %v1868, 256
  %vm1872 = vcmp.lt.s32.totalorder %v1869, 256
  %vm1873 = vcmp.lt.s32.totalorder %v1870, 256
  %v1874 = vsel %vm1871, 13, 12
  %v1875 = vsel %vm1872, 13, 12
  %v1876 = vsel %vm1873, 13, 12
  %vm1877 = vcmp.lt.s32.totalorder %v1868, 128
  %vm1878 = vcmp.lt.s32.totalorder %v1869, 128
  %vm1879 = vcmp.lt.s32.totalorder %v1870, 128
  %v1880 = vsel %vm1877, 14, %v1874
  %v1881 = vsel %vm1878, 14, %v1875
  %v1882 = vsel %vm1879, 14, %v1876
  %vm1883 = vcmp.lt.s32.totalorder %v370, %v1880
  %vm1884 = vcmp.lt.s32.totalorder %v370, %v1881
  %vm1885 = vcmp.lt.s32.totalorder %v370, %v1882
  %vm1886 = vcmp.lt.s32.totalorder %v371, %v1880
  %vm1887 = vcmp.lt.s32.totalorder %v371, %v1881
  %vm1888 = vcmp.lt.s32.totalorder %v371, %v1882
  %v1889 = vsel %vm1883, %v1819, 0.0
  %v1890 = vsel %vm1884, %v1820, 0.0
  %v1891 = vsel %vm1885, %v1821, 0.0
  %v1892 = vsel %vm1886, %v1822, 0.0
  %v1893 = vsel %vm1887, %v1823, 0.0
  %v1894 = vsel %vm1888, %v1824, 0.0
  %v1895 = vsel %vm1883, %v1825, 0.0
  %v1896 = vsel %vm1884, %v1826, 0.0
  %v1897 = vsel %vm1885, %v1827, 0.0
  %v1898 = vsel %vm1886, %v1828, 0.0
  %v1899 = vsel %vm1887, %v1829, 0.0
  %v1900 = vsel %vm1888, %v1830, 0.0
  %v1901 = vsel %vm1883, %v1831, 0.0
  %v1902 = vsel %vm1884, %v1832, 0.0
  %v1903 = vsel %vm1885, %v1833, 0.0
  %v1904 = vsel %vm1886, %v1834, 0.0
  %v1905 = vsel %vm1887, %v1835, 0.0
  %v1906 = vsel %vm1888, %v1836, 0.0
  %v1907 = vsel %vm1883, %v1837, 0.0
  %v1908 = vsel %vm1884, %v1838, 0.0
  %v1909 = vsel %vm1885, %v1839, 0.0
  %v1910 = vsel %vm1886, %v1840, 0.0
  %v1911 = vsel %vm1887, %v1841, 0.0
  %v1912 = vsel %vm1888, %v1842, 0.0
  %v1913 = vsel %vm1883, %v1843, 0.0
  %v1914 = vsel %vm1884, %v1844, 0.0
  %v1915 = vsel %vm1885, %v1845, 0.0
  %v1916 = vsel %vm1886, %v1846, 0.0
  %v1917 = vsel %vm1887, %v1847, 0.0
  %v1918 = vsel %vm1888, %v1848, 0.0
  %v1919 = vsel %vm1883, %v1849, 0.0
  %v1920 = vsel %vm1884, %v1850, 0.0
  %v1921 = vsel %vm1885, %v1851, 0.0
  %v1922 = vsel %vm1886, %v1852, 0.0
  %v1923 = vsel %vm1887, %v1853, 0.0
  %v1924 = vsel %vm1888, %v1854, 0.0
  %v1925 = vsel %vm1883, %v1855, 0.0
  %v1926 = vsel %vm1884, %v1856, 0.0
  %v1927 = vsel %vm1885, %v1857, 0.0
  %v1928 = vsel %vm1886, %v1858, 0.0
  %v1929 = vsel %vm1887, %v1859, 0.0
  %v1930 = vsel %vm1888, %v1860, 0.0
  %v1931 = vsel %vm1883, %v1861, 0.0
  %v1932 = vsel %vm1884, %v1862, 0.0
  %v1933 = vsel %vm1885, %v1863, 0.0
  %v1934 = vsel %vm1886, %v1864, 0.0
  %v1935 = vsel %vm1887, %v1865, 0.0
  %v1936 = vsel %vm1888, %v1866, 0.0
  %v1937 = vmax.f32 %v1889, %v1892
  %v1938 = vrot.slane %v1937, 4
  %v1939 = vmax.f32 %v1937, %v1938
  %v1940 = vrot.slane %v1939, 2
  %v1941 = vmax.f32 %v1939, %v1940
  %v1942 = vrot.slane %v1941, 1
  %v1943 = vmax.f32 %v1941, %v1942
  %v1944 = vmax.f32 %v1890, %v1893
  %v1945 = vrot.slane %v1944, 4
  %v1946 = vmax.f32 %v1944, %v1945
  %v1947 = vrot.slane %v1946, 2
  %v1948 = vmax.f32 %v1946, %v1947
  %v1949 = vrot.slane %v1948, 1
  %v1950 = vmax.f32 %v1948, %v1949
  %v1951 = vmax.f32 %v1891, %v1894
  %v1952 = vrot.slane %v1951, 4
  %v1953 = vmax.f32 %v1951, %v1952
  %v1954 = vrot.slane %v1953, 2
  %v1955 = vmax.f32 %v1953, %v1954
  %v1956 = vrot.slane %v1955, 1
  %v1957 = vmax.f32 %v1955, %v1956
  %v1958 = vmax.f32 %v1895, %v1898
  %v1959 = vrot.slane %v1958, 4
  %v1960 = vmax.f32 %v1958, %v1959
  %v1961 = vrot.slane %v1960, 2
  %v1962 = vmax.f32 %v1960, %v1961
  %v1963 = vrot.slane %v1962, 1
  %v1964 = vmax.f32 %v1962, %v1963
  %v1965 = vmax.f32 %v1896, %v1899
  %v1966 = vrot.slane %v1965, 4
  %v1967 = vmax.f32 %v1965, %v1966
  %v1968 = vrot.slane %v1967, 2
  %v1969 = vmax.f32 %v1967, %v1968
  %v1970 = vrot.slane %v1969, 1
  %v1971 = vmax.f32 %v1969, %v1970
  %v1972 = vmax.f32 %v1897, %v1900
  %v1973 = vrot.slane %v1972, 4
  %v1974 = vmax.f32 %v1972, %v1973
  %v1975 = vrot.slane %v1974, 2
  %v1976 = vmax.f32 %v1974, %v1975
  %v1977 = vrot.slane %v1976, 1
  %v1978 = vmax.f32 %v1976, %v1977
  %v1979 = vmax.f32 %v1901, %v1904
  %v1980 = vrot.slane %v1979, 4
  %v1981 = vmax.f32 %v1979, %v1980
  %v1982 = vrot.slane %v1981, 2
  %v1983 = vmax.f32 %v1981, %v1982
  %v1984 = vrot.slane %v1983, 1
  %v1985 = vmax.f32 %v1983, %v1984
  %v1986 = vmax.f32 %v1902, %v1905
  %v1987 = vrot.slane %v1986, 4
  %v1988 = vmax.f32 %v1986, %v1987
  %v1989 = vrot.slane %v1988, 2
  %v1990 = vmax.f32 %v1988, %v1989
  %v1991 = vrot.slane %v1990, 1
  %v1992 = vmax.f32 %v1990, %v1991
  %v1993 = vmax.f32 %v1903, %v1906
  %v1994 = vrot.slane %v1993, 4
  %v1995 = vmax.f32 %v1993, %v1994
  %v1996 = vrot.slane %v1995, 2
  %v1997 = vmax.f32 %v1995, %v1996
  %v1998 = vrot.slane %v1997, 1
  %v1999 = vmax.f32 %v1997, %v1998
  %v2000 = vmax.f32 %v1907, %v1910
  %v2001 = vrot.slane %v2000, 4
  %v2002 = vmax.f32 %v2000, %v2001
  %v2003 = vrot.slane %v2002, 2
  %v2004 = vmax.f32 %v2002, %v2003
  %v2005 = vrot.slane %v2004, 1
  %v2006 = vmax.f32 %v2004, %v2005
  %v2007 = vmax.f32 %v1908, %v1911
  %v2008 = vrot.slane %v2007, 4
  %v2009 = vmax.f32 %v2007, %v2008
  %v2010 = vrot.slane %v2009, 2
  %v2011 = vmax.f32 %v2009, %v2010
  %v2012 = vrot.slane %v2011, 1
  %v2013 = vmax.f32 %v2011, %v2012
  %v2014 = vmax.f32 %v1909, %v1912
  %v2015 = vrot.slane %v2014, 4
  %v2016 = vmax.f32 %v2014, %v2015
  %v2017 = vrot.slane %v2016, 2
  %v2018 = vmax.f32 %v2016, %v2017
  %v2019 = vrot.slane %v2018, 1
  %v2020 = vmax.f32 %v2018, %v2019
  %v2021 = vmax.f32 %v1913, %v1916
  %v2022 = vrot.slane %v2021, 4
  %v2023 = vmax.f32 %v2021, %v2022
  %v2024 = vrot.slane %v2023, 2
  %v2025 = vmax.f32 %v2023, %v2024
  %v2026 = vrot.slane %v2025, 1
  %v2027 = vmax.f32 %v2025, %v2026
  %v2028 = vmax.f32 %v1914, %v1917
  %v2029 = vrot.slane %v2028, 4
  %v2030 = vmax.f32 %v2028, %v2029
  %v2031 = vrot.slane %v2030, 2
  %v2032 = vmax.f32 %v2030, %v2031
  %v2033 = vrot.slane %v2032, 1
  %v2034 = vmax.f32 %v2032, %v2033
  %v2035 = vmax.f32 %v1915, %v1918
  %v2036 = vrot.slane %v2035, 4
  %v2037 = vmax.f32 %v2035, %v2036
  %v2038 = vrot.slane %v2037, 2
  %v2039 = vmax.f32 %v2037, %v2038
  %v2040 = vrot.slane %v2039, 1
  %v2041 = vmax.f32 %v2039, %v2040
  %v2042 = vmax.f32 %v1919, %v1922
  %v2043 = vrot.slane %v2042, 4
  %v2044 = vmax.f32 %v2042, %v2043
  %v2045 = vrot.slane %v2044, 2
  %v2046 = vmax.f32 %v2044, %v2045
  %v2047 = vrot.slane %v2046, 1
  %v2048 = vmax.f32 %v2046, %v2047
  %v2049 = vmax.f32 %v1920, %v1923
  %v2050 = vrot.slane %v2049, 4
  %v2051 = vmax.f32 %v2049, %v2050
  %v2052 = vrot.slane %v2051, 2
  %v2053 = vmax.f32 %v2051, %v2052
  %v2054 = vrot.slane %v2053, 1
  %v2055 = vmax.f32 %v2053, %v2054
  %v2056 = vmax.f32 %v1921, %v1924
  %v2057 = vrot.slane %v2056, 4
  %v2058 = vmax.f32 %v2056, %v2057
  %v2059 = vrot.slane %v2058, 2
  %v2060 = vmax.f32 %v2058, %v2059
  %v2061 = vrot.slane %v2060, 1
  %v2062 = vmax.f32 %v2060, %v2061
  %v2063 = vmax.f32 %v1925, %v1928
  %v2064 = vrot.slane %v2063, 4
  %v2065 = vmax.f32 %v2063, %v2064
  %v2066 = vrot.slane %v2065, 2
  %v2067 = vmax.f32 %v2065, %v2066
  %v2068 = vrot.slane %v2067, 1
  %v2069 = vmax.f32 %v2067, %v2068
  %v2070 = vmax.f32 %v1926, %v1929
  %v2071 = vrot.slane %v2070, 4
  %v2072 = vmax.f32 %v2070, %v2071
  %v2073 = vrot.slane %v2072, 2
  %v2074 = vmax.f32 %v2072, %v2073
  %v2075 = vrot.slane %v2074, 1
  %v2076 = vmax.f32 %v2074, %v2075
  %v2077 = vmax.f32 %v1927, %v1930
  %v2078 = vrot.slane %v2077, 4
  %v2079 = vmax.f32 %v2077, %v2078
  %v2080 = vrot.slane %v2079, 2
  %v2081 = vmax.f32 %v2079, %v2080
  %v2082 = vrot.slane %v2081, 1
  %v2083 = vmax.f32 %v2081, %v2082
  %v2084 = vmax.f32 %v1931, %v1934
  %v2085 = vrot.slane %v2084, 4
  %v2086 = vmax.f32 %v2084, %v2085
  %v2087 = vrot.slane %v2086, 2
  %v2088 = vmax.f32 %v2086, %v2087
  %v2089 = vrot.slane %v2088, 1
  %v2090 = vmax.f32 %v2088, %v2089
  %v2091 = vmax.f32 %v1932, %v1935
  %v2092 = vrot.slane %v2091, 4
  %v2093 = vmax.f32 %v2091, %v2092
  %v2094 = vrot.slane %v2093, 2
  %v2095 = vmax.f32 %v2093, %v2094
  %v2096 = vrot.slane %v2095, 1
  %v2097 = vmax.f32 %v2095, %v2096
  %v2098 = vmax.f32 %v1933, %v1936
  %v2099 = vrot.slane %v2098, 4
  %v2100 = vmax.f32 %v2098, %v2099
  %v2101 = vrot.slane %v2100, 2
  %v2102 = vmax.f32 %v2100, %v2101
  %v2103 = vrot.slane %v2102, 1
  %v2104 = vmax.f32 %v2102, %v2103
  %v2105 = vpack.c.bf16 %v1943, %v1943
  %v2106 = vpack.c.bf16 %v1950, %v1950
  %v2107 = vpack.c.bf16 %v1957, %v1957
  %v2108 = vpack.c.bf16 %v1964, %v1964
  %v2109 = vpack.c.bf16 %v1971, %v1971
  %v2110 = vpack.c.bf16 %v1978, %v1978
  %v2111 = vpack.c.bf16 %v1985, %v1985
  %v2112 = vpack.c.bf16 %v1992, %v1992
  %v2113 = vpack.c.bf16 %v1999, %v1999
  %v2114 = vpack.c.bf16 %v2006, %v2006
  %v2115 = vpack.c.bf16 %v2013, %v2013
  %v2116 = vpack.c.bf16 %v2020, %v2020
  %v2117 = vpack.c.bf16 %v2027, %v2027
  %v2118 = vpack.c.bf16 %v2034, %v2034
  %v2119 = vpack.c.bf16 %v2041, %v2041
  %v2120 = vpack.c.bf16 %v2048, %v2048
  %v2121 = vpack.c.bf16 %v2055, %v2055
  %v2122 = vpack.c.bf16 %v2062, %v2062
  %v2123 = vpack.c.bf16 %v2069, %v2069
  %v2124 = vpack.c.bf16 %v2076, %v2076
  %v2125 = vpack.c.bf16 %v2083, %v2083
  %v2126 = vpack.c.bf16 %v2090, %v2090
  %v2127 = vpack.c.bf16 %v2097, %v2097
  %v2128 = vpack.c.bf16 %v2104, %v2104
  %v2129 = vld [vmem:[%s3] sm:$0xf]
  %v2130 = vld [vmem:[%s3 + $0x4] sm:$0xf]
  %v2131 = vld [vmem:[%s3 + $0x8] sm:$0xf]
  %v2132 = vld [vmem:[%s3 + $0xc] sm:$0xf]
  %v2133 = vld [vmem:[%s3 + $0x10] sm:$0xf]
  %v2134 = vld [vmem:[%s3 + $0x14] sm:$0xf]
  %v2135 = vld [vmem:[%s3 + $0x18] sm:$0xf]
  %v2136 = vld [vmem:[%s3 + $0x1c] sm:$0xf]
  %v2137 = vld [vmem:[%s3 + $0x20] sm:$0xf]
  %v2138 = vld [vmem:[%s3 + $0x24] sm:$0xf]
  %v2139 = vld [vmem:[%s3 + $0x28] sm:$0xf]
  %v2140 = vld [vmem:[%s3 + $0x2c] sm:$0xf]
  %v2141 = vld [vmem:[%s3 + $0x30] sm:$0xf]
  %v2142 = vld [vmem:[%s3 + $0x34] sm:$0xf]
  %v2143 = vld [vmem:[%s3 + $0x38] sm:$0xf]
  %v2144 = vld [vmem:[%s3 + $0x3c] sm:$0xf]
  %v2145 = vld [vmem:[%s3 + $0x40] sm:$0xf]
  %v2146 = vld [vmem:[%s3 + $0x44] sm:$0xf]
  %v2147 = vld [vmem:[%s3 + $0x48] sm:$0xf]
  %v2148 = vld [vmem:[%s3 + $0x4c] sm:$0xf]
  %v2149 = vld [vmem:[%s3 + $0x50] sm:$0xf]
  %v2150 = vld [vmem:[%s3 + $0x54] sm:$0xf]
  %v2151 = vld [vmem:[%s3 + $0x58] sm:$0xf]
  %v2152 = vld [vmem:[%s3 + $0x5c] sm:$0xf]
  %v2153 = vld [vmem:[%s3 + $0x60] sm:$0xf]
  %v2154 = vld [vmem:[%s3 + $0x64] sm:$0xf]
  %v2155 = vld [vmem:[%s3 + $0x68] sm:$0xf]
  %v2156 = vld [vmem:[%s3 + $0x6c] sm:$0xf]
  %v2157 = vld [vmem:[%s3 + $0x70] sm:$0xf]
  %v2158 = vld [vmem:[%s3 + $0x74] sm:$0xf]
  %v2159 = vld [vmem:[%s3 + $0x78] sm:$0xf]
  %v2160 = vld [vmem:[%s3 + $0x7c] sm:$0xf]
  %v2161 = vld [vmem:[%s3 + $0x80] sm:$0xf]
  %v2162 = vld [vmem:[%s3 + $0x84] sm:$0xf]
  %v2163 = vld [vmem:[%s3 + $0x88] sm:$0xf]
  %v2164 = vld [vmem:[%s3 + $0x8c] sm:$0xf]
  %v2165 = vld [vmem:[%s3 + $0x90] sm:$0xf]
  %v2166 = vld [vmem:[%s3 + $0x94] sm:$0xf]
  %v2167 = vld [vmem:[%s3 + $0x98] sm:$0xf]
  %v2168 = vld [vmem:[%s3 + $0x9c] sm:$0xf]
  %v2169 = vld [vmem:[%s3 + $0xa0] sm:$0xf]
  %v2170 = vld [vmem:[%s3 + $0xa4] sm:$0xf]
  %v2171 = vld [vmem:[%s3 + $0xa8] sm:$0xf]
  %v2172 = vld [vmem:[%s3 + $0xac] sm:$0xf]
  %v2173 = vld [vmem:[%s3 + $0xb0] sm:$0xf]
  %v2174 = vld [vmem:[%s3 + $0xb4] sm:$0xf]
  %v2175 = vld [vmem:[%s3 + $0xb8] sm:$0xf]
  %v2176 = vld [vmem:[%s3 + $0xbc] sm:$0xf]
  %v2177 = vld [vmem:[%s4] sm:$0x1]
  %v2179 = vlaneseq
  %v2180 = vshrl.u32 %v2179, 7
  %v2181 = vsub.s32 0, %v2180
  %v2182 = vrot.slane %v2177, %v2181
  %v2208 = vunpack.c.l.b16 %v2105
  %v2209 = vunpack.c.l.b16 %v2106
  %v2210 = vunpack.c.l.b16 %v2107
  %v2211 = vunpack.c.l.b16 %v2108
  %v2212 = vunpack.c.l.b16 %v2109
  %v2213 = vunpack.c.l.b16 %v2110
  %v2214 = vunpack.c.l.b16 %v2111
  %v2215 = vunpack.c.l.b16 %v2112
  %v2216 = vunpack.c.l.b16 %v2113
  %v2217 = vunpack.c.l.b16 %v2114
  %v2218 = vunpack.c.l.b16 %v2115
  %v2219 = vunpack.c.l.b16 %v2116
  %v2220 = vunpack.c.l.b16 %v2117
  %v2221 = vunpack.c.l.b16 %v2118
  %v2222 = vunpack.c.l.b16 %v2119
  %v2223 = vunpack.c.l.b16 %v2120
  %v2224 = vunpack.c.l.b16 %v2121
  %v2225 = vunpack.c.l.b16 %v2122
  %v2226 = vunpack.c.l.b16 %v2123
  %v2227 = vunpack.c.l.b16 %v2124
  %v2228 = vunpack.c.l.b16 %v2125
  %v2229 = vunpack.c.l.b16 %v2126
  %v2230 = vunpack.c.l.b16 %v2127
  %v2231 = vunpack.c.l.b16 %v2128
  %vm2232 = vcmask 1041409
  %v2233 = vsel %vm2232, %v2211, %v2208
  %vm2234 = vcmask 1042434
  %v2235 = vsel %vm2234, %v2214, %v2233
  %vm2236 = vcmask 1043459
  %v2237 = vsel %vm2236, %v2217, %v2235
  %vm2238 = vcmask 1044484
  %v2239 = vsel %vm2238, %v2220, %v2237
  %vm2240 = vcmask 1045509
  %v2241 = vsel %vm2240, %v2223, %v2239
  %vm2242 = vcmask 1046534
  %v2243 = vsel %vm2242, %v2226, %v2241
  %vm2244 = vcmask 1047559
  %v2245 = vsel %vm2244, %v2229, %v2243
  %v2246 = vsel %vm2232, %v2212, %v2209
  %v2247 = vsel %vm2234, %v2215, %v2246
  %v2248 = vsel %vm2236, %v2218, %v2247
  %v2249 = vsel %vm2238, %v2221, %v2248
  %v2250 = vsel %vm2240, %v2224, %v2249
  %v2251 = vsel %vm2242, %v2227, %v2250
  %v2252 = vsel %vm2244, %v2230, %v2251
  %v2253 = vsel %vm2232, %v2213, %v2210
  %v2254 = vsel %vm2234, %v2216, %v2253
  %v2255 = vsel %vm2236, %v2219, %v2254
  %v2256 = vsel %vm2238, %v2222, %v2255
  %v2257 = vsel %vm2240, %v2225, %v2256
  %v2258 = vsel %vm2242, %v2228, %v2257
  %v2259 = vsel %vm2244, %v2231, %v2258
  %v2260 = vpack.c.b16 %v2245, %v2245
  %v2261 = vpack.c.b16 %v2252, %v2252
  %v2262 = vpack.c.b16 %v2259, %v2259
  %v2314 = vunpack.c.l.b16 %v2129
  %v2315 = vunpack.c.l.b16 %v2130
  %v2316 = vunpack.c.l.b16 %v2131
  %v2317 = vunpack.c.l.b16 %v2132
  %v2318 = vunpack.c.l.b16 %v2133
  %v2319 = vunpack.c.l.b16 %v2134
  %v2320 = vunpack.c.l.b16 %v2135
  %v2321 = vunpack.c.l.b16 %v2136
  %v2322 = vunpack.c.l.b16 %v2137
  %v2323 = vunpack.c.l.b16 %v2138
  %v2324 = vunpack.c.l.b16 %v2139
  %v2325 = vunpack.c.l.b16 %v2140
  %v2326 = vunpack.c.l.b16 %v2141
  %v2327 = vunpack.c.l.b16 %v2142
  %v2328 = vunpack.c.l.b16 %v2143
  %v2329 = vunpack.c.l.b16 %v2144
  %v2330 = vunpack.c.l.b16 %v2145
  %v2331 = vunpack.c.l.b16 %v2146
  %v2332 = vunpack.c.l.b16 %v2147
  %v2333 = vunpack.c.l.b16 %v2148
  %v2334 = vunpack.c.l.b16 %v2149
  %v2335 = vunpack.c.l.b16 %v2150
  %v2336 = vunpack.c.l.b16 %v2151
  %v2337 = vunpack.c.l.b16 %v2152
  %v2338 = vunpack.c.l.b16 %v2153
  %v2339 = vunpack.c.l.b16 %v2154
  %v2340 = vunpack.c.l.b16 %v2155
  %v2341 = vunpack.c.l.b16 %v2156
  %v2342 = vunpack.c.l.b16 %v2157
  %v2343 = vunpack.c.l.b16 %v2158
  %v2344 = vunpack.c.l.b16 %v2159
  %v2345 = vunpack.c.l.b16 %v2160
  %v2346 = vunpack.c.l.b16 %v2161
  %v2347 = vunpack.c.l.b16 %v2162
  %v2348 = vunpack.c.l.b16 %v2163
  %v2349 = vunpack.c.l.b16 %v2164
  %v2350 = vunpack.c.l.b16 %v2165
  %v2351 = vunpack.c.l.b16 %v2166
  %v2352 = vunpack.c.l.b16 %v2167
  %v2353 = vunpack.c.l.b16 %v2168
  %v2354 = vunpack.c.l.b16 %v2169
  %v2355 = vunpack.c.l.b16 %v2170
  %v2356 = vunpack.c.l.b16 %v2171
  %v2357 = vunpack.c.l.b16 %v2172
  %v2358 = vunpack.c.l.b16 %v2173
  %v2359 = vunpack.c.l.b16 %v2174
  %v2360 = vunpack.c.l.b16 %v2175
  %v2361 = vunpack.c.l.b16 %v2176
  %v2362 = vpack.c.b16 %v2315, %v2314
  %v2363 = vpack.c.b16 %v2317, %v2316
  %v2364 = vpack.c.b16 %v2319, %v2318
  %v2365 = vpack.c.b16 %v2321, %v2320
  %v2366 = vpack.c.b16 %v2323, %v2322
  %v2367 = vpack.c.b16 %v2325, %v2324
  %v2368 = vpack.c.b16 %v2327, %v2326
  %v2369 = vpack.c.b16 %v2329, %v2328
  %v2370 = vpack.c.b16 %v2331, %v2330
  %v2371 = vpack.c.b16 %v2333, %v2332
  %v2372 = vpack.c.b16 %v2335, %v2334
  %v2373 = vpack.c.b16 %v2337, %v2336
  %v2374 = vpack.c.b16 %v2339, %v2338
  %v2375 = vpack.c.b16 %v2341, %v2340
  %v2376 = vpack.c.b16 %v2343, %v2342
  %v2377 = vpack.c.b16 %v2345, %v2344
  %v2378 = vpack.c.b16 %v2347, %v2346
  %v2379 = vpack.c.b16 %v2349, %v2348
  %v2380 = vpack.c.b16 %v2351, %v2350
  %v2381 = vpack.c.b16 %v2353, %v2352
  %v2382 = vpack.c.b16 %v2355, %v2354
  %v2383 = vpack.c.b16 %v2357, %v2356
  %v2384 = vpack.c.b16 %v2359, %v2358
  %v2385 = vpack.c.b16 %v2361, %v2360
  %2410 = vmatprep.subr.bf16.mxu0 0
  %2411 = vmatpush1.bf16.msra.mxu0 %v2362
  %2412 = vmatprep.subr.bf16.mxu0 0
  %2413 = vmatpush1.bf16.msra.mxu0 %v2363
  %2414 = vmatprep.subr.bf16.mxu0 0
  %2415 = vmatpush1.bf16.msra.mxu0 %v2364
  %2416 = vmatprep.subr.bf16.mxu0 0
  %2417 = vmatpush1.bf16.msra.mxu0 %v2365
  %2418 = vmatprep.subr.bf16.mxu0 0
  %2419 = vmatpush1.bf16.msra.mxu0 %v2366
  %2420 = vmatprep.subr.bf16.mxu0 0
  %2421 = vmatpush1.bf16.msra.mxu0 %v2367
  %2422 = vmatprep.subr.bf16.mxu0 0
  %2423 = vmatpush1.bf16.msra.mxu0 %v2368
  %2424 = vmatprep.subr.bf16.mxu0 0
  %2425 = vmatpush1.bf16.msra.mxu0 %v2369
  %2426 = vmatprep.subr.bf16.mxu0 0
  %2427 = vmatpush1.bf16.msra.mxu0 %v2370
  %2428 = vmatprep.subr.bf16.mxu0 0
  %2429 = vmatpush1.bf16.msra.mxu0 %v2371
  %2430 = vmatprep.subr.bf16.mxu0 0
  %2431 = vmatpush1.bf16.msra.mxu0 %v2372
  %2432 = vmatprep.subr.bf16.mxu0 0
  %2433 = vmatpush1.bf16.msra.mxu0 %v2373
  %2434 = vmatprep.subr.bf16.mxu0 0
  %2435 = vmatpush1.bf16.msra.mxu0 %v2374
  %2436 = vmatprep.subr.bf16.mxu0 0
  %2437 = vmatpush1.bf16.msra.mxu0 %v2375
  %2438 = vmatprep.subr.bf16.mxu0 0
  %2439 = vmatpush1.bf16.msra.mxu0 %v2376
  %2440 = vmatprep.subr.bf16.mxu0 0
  %2441 = vmatpush1.bf16.msra.mxu0 %v2377
  %2442 = vmatprep.mubr.bf16.mxu0 %v2261
  %2443 = vmatmul.mubr.bf16.gmra.mrb[0].mxu0 %v2260
  %v2444 = vpop.f32.mrb[0].mxu0
  %v2445 = vadd.f32 %v2182, %v2444
  %v2446 = vpop.f32.mrb[0].mxu0
  %v2447 = vpop.f32.mrb[0].mxu0
  %v2448 = vpop.f32.mrb[0].mxu0
  %2449 = vdwg.mxu0
  %2450 = vmatprep.subr.bf16.mxu0 0
  %2451 = vmatpush1.bf16.msra.mxu0 %v2378
  %2452 = vmatprep.subr.bf16.mxu0 0
  %2453 = vmatpush1.bf16.msra.mxu0 %v2379
  %2454 = vmatprep.subr.bf16.mxu0 0
  %2455 = vmatpush1.bf16.msra.mxu0 %v2380
  %2456 = vmatprep.subr.bf16.mxu0 0
  %2457 = vmatpush1.bf16.msra.mxu0 %v2381
  %2458 = vmatprep.subr.bf16.mxu0 0
  %2459 = vmatpush1.bf16.msra.mxu0 %v2382
  %2460 = vmatprep.subr.bf16.mxu0 0
  %2461 = vmatpush1.bf16.msra.mxu0 %v2383
  %2462 = vmatprep.subr.bf16.mxu0 0
  %2463 = vmatpush1.bf16.msra.mxu0 %v2384
  %2464 = vmatprep.subr.bf16.mxu0 0
  %2465 = vmatpush1.bf16.msra.mxu0 %v2385
  %2466 = vmatprep.subr.bf16.mxu0 0
  %2467 = vmatpush1.bf16.msra.mxu0 0
  %2468 = vmatprep.subr.bf16.mxu0 0
  %2469 = vmatpush1.bf16.msra.mxu0 0
  %2470 = vmatprep.subr.bf16.mxu0 0
  %2471 = vmatpush1.bf16.msra.mxu0 0
  %2472 = vmatprep.subr.bf16.mxu0 0
  %2473 = vmatpush1.bf16.msra.mxu0 0
  %2474 = vmatprep.subr.bf16.mxu0 0
  %2475 = vmatpush1.bf16.msra.mxu0 0
  %2476 = vmatprep.subr.bf16.mxu0 0
  %2477 = vmatpush1.bf16.msra.mxu0 0
  %2478 = vmatprep.subr.bf16.mxu0 0
  %2479 = vmatpush1.bf16.msra.mxu0 0
  %2480 = vmatprep.subr.bf16.mxu0 0
  %2481 = vmatpush1.bf16.msra.mxu0 0
  %2482 = vmatprep.mubr.bf16.mxu0 0
  %2483 = vmatmul.mubr.bf16.gmra.mrb[0].mxu0 %v2262
  %v2484 = vpop.f32.mrb[0].mxu0
  %v2485 = vadd.f32 %v2445, %v2484
  %v2486 = vpop.f32.mrb[0].mxu0
  %v2487 = vpop.f32.mrb[0].mxu0
  %v2488 = vpop.f32.mrb[0].mxu0
  %2489 = vdwg.mxu0
  %2490 = vst [vmem:[%s5] sm:$0xff] %v2485
  // Predicated region
  $region22: #{cnn_text_forward.1} parent=0 // pred_check
    _
  $region23: #{cnn_text_forward.1} parent=0 // pred_check_branch
    %2492 = sbr.rel (0) target = $region25
  $region24: #{cnn_text_forward.1} parent=0 // pred_region
    _
  $region25: #{cnn_text_forward.1} parent=0 // pred_fallthru
    _
  // Predicated region
  $region26: #{cnn_text_forward.1} parent=0 // pred_check
    _
  $region27: #{cnn_text_forward.1} parent=0 // pred_check_branch
    %2494 = sbr.rel (0) target = $region29
  $region28: #{cnn_text_forward.1} parent=0 // pred_region
    _
  $region29: #{cnn_text_forward.1} parent=0 // pred_fallthru
    _

</llo_original>
